<compile_context>
chip_gen: v6e
topology: v6e:2x2x1
jax: 0.10.0
libtpu: 0.0.40
codegen_flags: <defaults>
</compile_context>

<pallas_src>
import jax
import jax.numpy as jnp
from jax.experimental import pallas as pl
from jax.experimental.pallas import tpu as pltpu


def _enhancer_kernel(emb_ref, sa_ref,
                     wb_ref, bb_ref,      # conv1d_bert:        W^T (D,D), bias (1,D)
                     wt_ref, bt_ref,      # conv1d_transformer: W^T (D,D), bias (1,D)
                     wl_ref, bl_ref,      # linear:             W^T (D,D), bias (1,D)
                     out_ref, sa1_ref, sa2_ref, emb1_ref, emb2_ref, masks_ref):
    Bt, S, D = emb_ref.shape

    emb = emb_ref[...]                                   # (Bt, S, D)
    sa = sa_ref[...]                                     # (Bt, S, D)

    # Conv1d(k=1) == per-position channel mixing.  Collapse batch*seq so the
    # MXU gets M = Bt*S rows per push (leading-dim merge only; lane dim D is
    # unchanged, so this reshape is layout-free).
    emb_conv = jnp.dot(emb.reshape(Bt * S, D), wb_ref[...],
                       preferred_element_type=jnp.float32) + bb_ref[...]
    sa_conv = jnp.dot(sa.reshape(Bt * S, D), wt_ref[...],
                      preferred_element_type=jnp.float32) + bt_ref[...]
    emb_conv = emb_conv.reshape(Bt, S, D)
    sa_conv = sa_conv.reshape(Bt, S, D)

    # Pools are per batch element over the sequence axis (NOT the flat axis).
    mask_input = jnp.max(emb_conv, axis=1) + jnp.mean(emb_conv, axis=1)   # (Bt, D)
    gap = jnp.mean(sa_conv, axis=1)                                       # (Bt, D)

    # Shared nn.Linear for both branches, fused into one (2*Bt, D) matmul and
    # one sigmoid launch.
    lin_in = jnp.concatenate([mask_input, gap], axis=0)                   # (2Bt, D)
    lin_out = jax.nn.sigmoid(
        jnp.dot(lin_in, wl_ref[...], preferred_element_type=jnp.float32)
        + bl_ref[...])
    em_mask1 = lin_out[:Bt]                                               # (Bt, D)
    sa_mask1 = lin_out[Bt:]                                               # (Bt, D)

    # softmax over the stacked pair of masks (dim=1 of the (B, 2, D) stack).
    m = jnp.maximum(em_mask1, sa_mask1)
    e_em = jnp.exp(em_mask1 - m)
    e_sa = jnp.exp(sa_mask1 - m)
    inv = 1.0 / (e_em + e_sa)
    em_mask2 = e_em * inv
    sa_mask2 = e_sa * inv

    emb1 = emb * em_mask1[:, None, :]
    sa1 = sa * sa_mask1[:, None, :]
    emb2 = emb1 * em_mask2[:, None, :]
    sa2 = sa1 * sa_mask2[:, None, :]

    out_ref[...] = emb2 + sa2
    sa1_ref[...] = sa1
    sa2_ref[...] = sa2
    emb1_ref[...] = emb1
    emb2_ref[...] = emb2
    # Pack the 5 per-batch (Bt, D) vectors into a single (Bt, 5, D) store.
    masks_ref[...] = jnp.stack(
        [sa_mask1, sa_mask2, em_mask1, em_mask2, mask_input], axis=1)


def _choose_block_batch(B, S, D):
    """How many batch elements to process per grid step."""
    seq_tile_bytes = S * D * 4
    # 2 seq inputs + 5 seq outputs, double-buffered, plus ~4 seq-sized live
    # intermediates -> ~18 seq-sized copies per batch element in VMEM.
    per_elem = 18 * seq_tile_bytes
    vmem_budget = 32 * 1024 * 1024          # conservative: fits v7x's 64 MiB VMEM
    cap = max(1, vmem_budget // per_elem)
    # Target M = Bt*S >= 256 rows for the MXU and a >= ~2 MiB seq tile.
    want = max(pl.cdiv(256, S), pl.cdiv(2 * 1024 * 1024, seq_tile_bytes))
    bt = max(1, min(B, cap, want))
    while B % bt:                            # largest divisor of B that fits
        bt -= 1
    # Prefer a grid of length >= 2 (two TensorCores on v7x) when halving the
    # block still leaves a well-filled MXU.
    if B // bt < 2 and bt % 2 == 0 and (bt // 2) * S >= 256:
        bt //= 2
    return bt


def _build_call(B, S, D, Bt, single_buffer_params):
    seq_spec = pl.BlockSpec((Bt, S, D), lambda b: (b, 0, 0))
    masks_spec = pl.BlockSpec((Bt, 5, D), lambda b: (b, 0, 0))
    if single_buffer_params:
        # Grid-invariant weights/biases: keep them resident in VMEM with a
        # single buffer instead of double-buffering them every step.
        w_spec = pl.BlockSpec((D, D), lambda b: (0, 0),
                              pipeline_mode=pl.Buffered(1))
        b_spec = pl.BlockSpec((1, D), lambda b: (0, 0),
                              pipeline_mode=pl.Buffered(1))
    else:
        w_spec = pl.BlockSpec((D, D), lambda b: (0, 0))
        b_spec = pl.BlockSpec((1, D), lambda b: (0, 0))

    seq_shape = jax.ShapeDtypeStruct((B, S, D), jnp.float32)
    masks_shape = jax.ShapeDtypeStruct((B, 5, D), jnp.float32)

    # Explicit VMEM budget: double-buffered seq I/O + live intermediates +
    # weights + packed mask output, with 2x headroom, clamped to stay under
    # v7x's 64 MiB physical VMEM.
    tile_bytes = Bt * S * D * 4
    needed = 18 * tile_bytes + 3 * D * D * 4 + 2 * Bt * 5 * D * 4 + (1 << 20)
    vmem_limit = int(min(56 * 1024 * 1024, max(16 * 1024 * 1024, 2 * needed)))

    return pl.pallas_call(
        _enhancer_kernel,
        out_shape=(seq_shape,) * 5 + (masks_shape,),
        grid_spec=pltpu.PrefetchScalarGridSpec(
            num_scalar_prefetch=0,
            grid=(B // Bt,),
            in_specs=[seq_spec, seq_spec,
                      w_spec, b_spec, w_spec, b_spec, w_spec, b_spec],
            out_specs=(seq_spec,) * 5 + (masks_spec,),
        ),
        compiler_params=pltpu.CompilerParams(
            dimension_semantics=("parallel",),
            vmem_limit_bytes=vmem_limit),
    )


def sentence_embedding_enhancer(embeddings_A, SA_A, params):
    """Forward pass of SentenceEmbeddingEnhancer on (B, S, D) float32 inputs.

    Returns the same 10-tuple as the PyTorch module:
      (SA_A_output, SA_Mask1, SA_Mask2, SA_A1, SA_A2,
       Em_Mask1, Em_Mask2, mask_input, embeddings_A1, embeddings_A2)
    """
    B, S, D = embeddings_A.shape
    assert SA_A.shape == (B, S, D)
    f32 = jnp.float32
    embeddings_A = embeddings_A.astype(f32)
    SA_A = SA_A.astype(f32)

    # Pre-transpose once so the kernel does plain A @ B (PyTorch stores
    # Conv1d weight as (out, in, 1) and Linear weight as (out, in)).
    wbT = jnp.asarray(params["w_bert"], f32).T        # (in, out)
    wtT = jnp.asarray(params["w_trans"], f32).T
    wlT = jnp.asarray(params["w_lin"], f32).T
    bb = jnp.asarray(params["b_bert"], f32).reshape(1, D)
    btr = jnp.asarray(params["b_trans"], f32).reshape(1, D)
    bl = jnp.asarray(params["b_lin"], f32).reshape(1, D)

    Bt = _choose_block_batch(B, S, D)
    args = (embeddings_A, SA_A, wbT, bb, wtT, btr, wlT, bl)

    try:
        outs = _build_call(B, S, D, Bt, single_buffer_params=True)(*args)
    except Exception:
        # pipeline_mode=pl.Buffered(1) unsupported on this jax version:
        # fall back to default (double-buffered) weight specs.
        outs = _build_call(B, S, D, Bt, single_buffer_params=False)(*args)

    sa_out, sa1, sa2, emb1, emb2, masks = outs
    sa_mask1 = masks[:, 0, :]
    sa_mask2 = masks[:, 1, :]
    em_mask1 = masks[:, 2, :]
    em_mask2 = masks[:, 3, :]
    mask_input = masks[:, 4, :]
    return (sa_out, sa_mask1, sa_mask2, sa1, sa2,
            em_mask1, em_mask2, mask_input, emb1, emb2)


def _reference(embeddings_A, SA_A, params):
    """Pure-JAX reference matching the PyTorch forward (all 10 outputs)."""
    w_bert, b_bert = params["w_bert"], params["b_bert"].reshape(-1)
    w_trans, b_trans = params["w_trans"], params["b_trans"].reshape(-1)
    w_lin, b_lin = params["w_lin"], params["b_lin"].reshape(-1)

    emb_conv = jnp.einsum("bsd,od->bso", embeddings_A, w_bert) + b_bert
    mask_input = jnp.max(emb_conv, axis=1) + jnp.mean(emb_conv, axis=1)
    em_mask1 = jax.nn.sigmoid(mask_input @ w_lin.T + b_lin)
    emb1 = embeddings_A * em_mask1[:, None, :]

    sa_conv = jnp.einsum("bsd,od->bso", SA_A, w_trans) + b_trans
    gap = jnp.mean(sa_conv, axis=1)
    sa_mask1 = jax.nn.sigmoid(gap @ w_lin.T + b_lin)
    sa1 = SA_A * sa_mask1[:, None, :]

    masks = jax.nn.softmax(jnp.stack([em_mask1, sa_mask1], axis=1), axis=1)
    em_mask2, sa_mask2 = masks[:, 0, :], masks[:, 1, :]
    emb2 = emb1 * em_mask2[:, None, :]
    sa2 = sa1 * sa_mask2[:, None, :]
    out = emb2 + sa2
    return (out, sa_mask1, sa_mask2, sa1, sa2,
            em_mask1, em_mask2, mask_input, emb1, emb2)


# TODO(synk): the BERT / TransformerEncoder backbones, tokenizer, cosine
# similarity head and matplotlib heatmaps of SentenceSimilarityModel are not
# kernelized here; this kernel covers the SentenceEmbeddingEnhancer forward.

if __name__ == "__main__":
    # Small but representative shapes.  D = 128 keeps all stores lane-dense
    # (the real model uses BERT hidden size 768, also a multiple of 128);
    # S = 16 keeps the batch*seq flattening layout-free.
    B, S, D = 4, 16, 128
    key = jax.random.PRNGKey(0)
    k = jax.random.split(key, 8)

    embeddings_A = jax.random.normal(k[0], (B, S, D), dtype=jnp.float32)
    SA_A = jax.random.normal(k[1], (B, S, D), dtype=jnp.float32)

    scale = 1.0 / jnp.sqrt(jnp.float32(D))
    params = {
        "w_bert":  jax.random.uniform(k[2], (D, D), jnp.float32, -scale, scale),
        "b_bert":  jax.random.uniform(k[3], (1, D), jnp.float32, -scale, scale),
        "w_trans": jax.random.uniform(k[4], (D, D), jnp.float32, -scale, scale),
        "b_trans": jax.random.uniform(k[5], (1, D), jnp.float32, -scale, scale),
        "w_lin":   jax.random.uniform(k[6], (D, D), jnp.float32, -scale, scale),
        "b_lin":   jax.random.uniform(k[7], (1, D), jnp.float32, -scale, scale),
    }

    outs = sentence_embedding_enhancer(embeddings_A, SA_A, params)
    outs = jax.block_until_ready(outs)

    refs = _reference(embeddings_A, SA_A, params)
    names = ("SA_A_output", "SA_Mask1", "SA_Mask2", "SA_A1", "SA_A2",
             "Em_Mask1", "Em_Mask2", "mask_input", "embeddings_A1",
             "embeddings_A2")
    for name, got, want in zip(names, outs, refs):
        assert got.shape == want.shape, (name, got.shape, want.shape)
        assert jnp.allclose(got, want, rtol=1e-4, atol=1e-5), f"mismatch: {name}"

    print("KERNEL_OK")
</pallas_src>

<mosaic_0001>
module attributes {stable_mosaic.version = 11 : i64} {
  func.func @_enhancer_kernel(%arg0: i32, %arg1: memref<4x16x128xf32, #tpu.memory_space<vmem>>, %arg2: memref<4x16x128xf32, #tpu.memory_space<vmem>>, %arg3: memref<128x128xf32, #tpu.memory_space<vmem>>, %arg4: memref<1x128xf32, #tpu.memory_space<vmem>>, %arg5: memref<128x128xf32, #tpu.memory_space<vmem>>, %arg6: memref<1x128xf32, #tpu.memory_space<vmem>>, %arg7: memref<128x128xf32, #tpu.memory_space<vmem>>, %arg8: memref<1x128xf32, #tpu.memory_space<vmem>>, %arg9: memref<4x16x128xf32, #tpu.memory_space<vmem>>, %arg10: memref<4x16x128xf32, #tpu.memory_space<vmem>>, %arg11: memref<4x16x128xf32, #tpu.memory_space<vmem>>, %arg12: memref<4x16x128xf32, #tpu.memory_space<vmem>>, %arg13: memref<4x16x128xf32, #tpu.memory_space<vmem>>, %arg14: memref<4x5x128xf32, #tpu.memory_space<vmem>>) attributes {dimension_semantics = [#tpu.dimension_semantics<parallel>], iteration_bounds = array<i64: 1>, scalar_prefetch = 0 : i64, scratch_operands = 0 : i64, tpu.core_type = #tpu.core_type<tc>, window_params = [{transform_indices = @transform_0, window_bounds = array<i64: 4, 16, 128>}, {transform_indices = @transform_1, window_bounds = array<i64: 4, 16, 128>}, {pipeline_mode = #tpu.pipeline_mode<synchronous>, transform_indices = @transform_2, window_bounds = array<i64: 128, 128>}, {pipeline_mode = #tpu.pipeline_mode<synchronous>, transform_indices = @transform_3, window_bounds = array<i64: 1, 128>}, {pipeline_mode = #tpu.pipeline_mode<synchronous>, transform_indices = @transform_4, window_bounds = array<i64: 128, 128>}, {pipeline_mode = #tpu.pipeline_mode<synchronous>, transform_indices = @transform_5, window_bounds = array<i64: 1, 128>}, {pipeline_mode = #tpu.pipeline_mode<synchronous>, transform_indices = @transform_6, window_bounds = array<i64: 128, 128>}, {pipeline_mode = #tpu.pipeline_mode<synchronous>, transform_indices = @transform_7, window_bounds = array<i64: 1, 128>}, {transform_indices = @transform_8, window_bounds = array<i64: 4, 16, 128>}, {transform_indices = @transform_9, window_bounds = array<i64: 4, 16, 128>}, {transform_indices = @transform_10, window_bounds = array<i64: 4, 16, 128>}, {transform_indices = @transform_11, window_bounds = array<i64: 4, 16, 128>}, {transform_indices = @transform_12, window_bounds = array<i64: 4, 16, 128>}, {transform_indices = @transform_13, window_bounds = array<i64: 4, 5, 128>}]} {
    %c0 = arith.constant 0 : index
    %c0_0 = arith.constant 0 : index
    %c0_1 = arith.constant 0 : index
    %0 = vector.load %arg1[%c0, %c0_0, %c0_1] : memref<4x16x128xf32, #tpu.memory_space<vmem>>, vector<4x16x128xf32>
    %c0_2 = arith.constant 0 : index
    %c0_3 = arith.constant 0 : index
    %c0_4 = arith.constant 0 : index
    %1 = vector.load %arg2[%c0_2, %c0_3, %c0_4] : memref<4x16x128xf32, #tpu.memory_space<vmem>>, vector<4x16x128xf32>
    %2 = vector.shape_cast %0 : vector<4x16x128xf32> to vector<64x128xf32>
    %c0_5 = arith.constant 0 : index
    %c0_6 = arith.constant 0 : index
    %3 = vector.load %arg3[%c0_5, %c0_6] : memref<128x128xf32, #tpu.memory_space<vmem>>, vector<128x128xf32>
    %cst = arith.constant dense<0.000000e+00> : vector<64x128xf32>
    %4 = tpu.matmul %2, %3, %cst {dimension_numbers = #tpu.dot_dimension_numbers<[1], [0], [0], [1], [0, 0, 1, 1], [], []>} : vector<64x128xf32>, vector<128x128xf32>, vector<64x128xf32> -> vector<64x128xf32>
    %c0_7 = arith.constant 0 : index
    %c0_8 = arith.constant 0 : index
    %5 = vector.load %arg4[%c0_7, %c0_8] : memref<1x128xf32, #tpu.memory_space<vmem>>, vector<1x128xf32>
    %6 = vector.broadcast %5 : vector<1x128xf32> to vector<64x128xf32>
    %7 = arith.addf %4, %6 : vector<64x128xf32>
    %8 = vector.shape_cast %1 : vector<4x16x128xf32> to vector<64x128xf32>
    %c0_9 = arith.constant 0 : index
    %c0_10 = arith.constant 0 : index
    %9 = vector.load %arg5[%c0_9, %c0_10] : memref<128x128xf32, #tpu.memory_space<vmem>>, vector<128x128xf32>
    %cst_11 = arith.constant dense<0.000000e+00> : vector<64x128xf32>
    %10 = tpu.matmul %8, %9, %cst_11 {dimension_numbers = #tpu.dot_dimension_numbers<[1], [0], [0], [1], [0, 0, 1, 1], [], []>} : vector<64x128xf32>, vector<128x128xf32>, vector<64x128xf32> -> vector<64x128xf32>
    %c0_12 = arith.constant 0 : index
    %c0_13 = arith.constant 0 : index
    %11 = vector.load %arg6[%c0_12, %c0_13] : memref<1x128xf32, #tpu.memory_space<vmem>>, vector<1x128xf32>
    %12 = vector.broadcast %11 : vector<1x128xf32> to vector<64x128xf32>
    %13 = arith.addf %10, %12 : vector<64x128xf32>
    %14 = vector.shape_cast %7 : vector<64x128xf32> to vector<4x16x128xf32>
    %15 = vector.shape_cast %13 : vector<64x128xf32> to vector<4x16x128xf32>
    %cst_14 = arith.constant dense<0xFF800000> : vector<4x128xf32>
    %16 = vector.multi_reduction <maximumf>, %14, %cst_14 [1] : vector<4x16x128xf32> to vector<4x128xf32>
    %cst_15 = arith.constant dense<0.000000e+00> : vector<4x128xf32>
    %17 = vector.multi_reduction <add>, %14, %cst_15 [1] : vector<4x16x128xf32> to vector<4x128xf32>
    %cst_16 = arith.constant 1.600000e+01 : f32
    %18 = vector.broadcast %cst_16 : f32 to vector<4x128xf32>
    %19 = arith.divf %17, %18 : vector<4x128xf32>
    %20 = arith.addf %16, %19 : vector<4x128xf32>
    %cst_17 = arith.constant dense<0.000000e+00> : vector<4x128xf32>
    %21 = vector.multi_reduction <add>, %15, %cst_17 [1] : vector<4x16x128xf32> to vector<4x128xf32>
    %cst_18 = arith.constant 1.600000e+01 : f32
    %22 = vector.broadcast %cst_18 : f32 to vector<4x128xf32>
    %23 = arith.divf %21, %22 : vector<4x128xf32>
    %24 = tpu.concatenate %20, %23 in 0 : vector<4x128xf32>, vector<4x128xf32> -> vector<8x128xf32>
    %c0_19 = arith.constant 0 : index
    %c0_20 = arith.constant 0 : index
    %25 = vector.load %arg7[%c0_19, %c0_20] : memref<128x128xf32, #tpu.memory_space<vmem>>, vector<128x128xf32>
    %cst_21 = arith.constant dense<0.000000e+00> : vector<8x128xf32>
    %26 = tpu.matmul %24, %25, %cst_21 {dimension_numbers = #tpu.dot_dimension_numbers<[1], [0], [0], [1], [0, 0, 1, 1], [], []>} : vector<8x128xf32>, vector<128x128xf32>, vector<8x128xf32> -> vector<8x128xf32>
    %c0_22 = arith.constant 0 : index
    %c0_23 = arith.constant 0 : index
    %27 = vector.load %arg8[%c0_22, %c0_23] : memref<1x128xf32, #tpu.memory_space<vmem>>, vector<1x128xf32>
    %28 = vector.broadcast %27 : vector<1x128xf32> to vector<8x128xf32>
    %29 = arith.addf %26, %28 : vector<8x128xf32>
    %30 = arith.negf %29 : vector<8x128xf32>
    %31 = math.exp %30 : vector<8x128xf32>
    %cst_24 = arith.constant 1.000000e+00 : f32
    %32 = vector.broadcast %cst_24 : f32 to vector<8x128xf32>
    %33 = arith.addf %32, %31 : vector<8x128xf32>
    %34 = arith.divf %32, %33 : vector<8x128xf32>
    %35 = vector.extract_strided_slice %34 {offsets = [0, 0], sizes = [4, 128], strides = [1, 1]} : vector<8x128xf32> to vector<4x128xf32>
    %36 = vector.extract_strided_slice %34 {offsets = [4, 0], sizes = [4, 128], strides = [1, 1]} : vector<8x128xf32> to vector<4x128xf32>
    %37 = arith.maximumf %35, %36 : vector<4x128xf32>
    %38 = arith.subf %35, %37 : vector<4x128xf32>
    %39 = math.exp %38 : vector<4x128xf32>
    %40 = arith.subf %36, %37 : vector<4x128xf32>
    %41 = math.exp %40 : vector<4x128xf32>
    %42 = arith.addf %39, %41 : vector<4x128xf32>
    %cst_25 = arith.constant 1.000000e+00 : f32
    %43 = vector.broadcast %cst_25 : f32 to vector<4x128xf32>
    %44 = arith.divf %43, %42 : vector<4x128xf32>
    %45 = arith.mulf %39, %44 : vector<4x128xf32>
    %46 = arith.mulf %41, %44 : vector<4x128xf32>
    %47 = vector.shape_cast %35 : vector<4x128xf32> to vector<4x1x128xf32>
    %48 = vector.broadcast %47 : vector<4x1x128xf32> to vector<4x16x128xf32>
    %49 = arith.mulf %0, %48 : vector<4x16x128xf32>
    %50 = vector.shape_cast %36 : vector<4x128xf32> to vector<4x1x128xf32>
    %51 = vector.broadcast %50 : vector<4x1x128xf32> to vector<4x16x128xf32>
    %52 = arith.mulf %1, %51 : vector<4x16x128xf32>
    %53 = vector.shape_cast %45 : vector<4x128xf32> to vector<4x1x128xf32>
    %54 = vector.broadcast %53 : vector<4x1x128xf32> to vector<4x16x128xf32>
    %55 = arith.mulf %49, %54 : vector<4x16x128xf32>
    %56 = vector.shape_cast %46 : vector<4x128xf32> to vector<4x1x128xf32>
    %57 = vector.broadcast %56 : vector<4x1x128xf32> to vector<4x16x128xf32>
    %58 = arith.mulf %52, %57 : vector<4x16x128xf32>
    %59 = arith.addf %55, %58 : vector<4x16x128xf32>
    %c0_26 = arith.constant 0 : index
    %c0_27 = arith.constant 0 : index
    %c0_28 = arith.constant 0 : index
    %60 = vector.load %arg9[%c0_26, %c0_27, %c0_28] : memref<4x16x128xf32, #tpu.memory_space<vmem>>, vector<4x16x128xf32>
    tpu.vector_store %arg9[%c0_26, %c0_27, %c0_28], %59 {strides = array<i32>} : memref<4x16x128xf32, #tpu.memory_space<vmem>>, vector<4x16x128xf32>,
    %c0_29 = arith.constant 0 : index
    %c0_30 = arith.constant 0 : index
    %c0_31 = arith.constant 0 : index
    %61 = vector.load %arg10[%c0_29, %c0_30, %c0_31] : memref<4x16x128xf32, #tpu.memory_space<vmem>>, vector<4x16x128xf32>
    tpu.vector_store %arg10[%c0_29, %c0_30, %c0_31], %52 {strides = array<i32>} : memref<4x16x128xf32, #tpu.memory_space<vmem>>, vector<4x16x128xf32>,
    %c0_32 = arith.constant 0 : index
    %c0_33 = arith.constant 0 : index
    %c0_34 = arith.constant 0 : index
    %62 = vector.load %arg11[%c0_32, %c0_33, %c0_34] : memref<4x16x128xf32, #tpu.memory_space<vmem>>, vector<4x16x128xf32>
    tpu.vector_store %arg11[%c0_32, %c0_33, %c0_34], %58 {strides = array<i32>} : memref<4x16x128xf32, #tpu.memory_space<vmem>>, vector<4x16x128xf32>,
    %c0_35 = arith.constant 0 : index
    %c0_36 = arith.constant 0 : index
    %c0_37 = arith.constant 0 : index
    %63 = vector.load %arg12[%c0_35, %c0_36, %c0_37] : memref<4x16x128xf32, #tpu.memory_space<vmem>>, vector<4x16x128xf32>
    tpu.vector_store %arg12[%c0_35, %c0_36, %c0_37], %49 {strides = array<i32>} : memref<4x16x128xf32, #tpu.memory_space<vmem>>, vector<4x16x128xf32>,
    %c0_38 = arith.constant 0 : index
    %c0_39 = arith.constant 0 : index
    %c0_40 = arith.constant 0 : index
    %64 = vector.load %arg13[%c0_38, %c0_39, %c0_40] : memref<4x16x128xf32, #tpu.memory_space<vmem>>, vector<4x16x128xf32>
    tpu.vector_store %arg13[%c0_38, %c0_39, %c0_40], %55 {strides = array<i32>} : memref<4x16x128xf32, #tpu.memory_space<vmem>>, vector<4x16x128xf32>,
    %65 = vector.shape_cast %36 : vector<4x128xf32> to vector<4x1x128xf32>
    %66 = vector.shape_cast %46 : vector<4x128xf32> to vector<4x1x128xf32>
    %67 = vector.shape_cast %35 : vector<4x128xf32> to vector<4x1x128xf32>
    %68 = vector.shape_cast %45 : vector<4x128xf32> to vector<4x1x128xf32>
    %69 = vector.shape_cast %20 : vector<4x128xf32> to vector<4x1x128xf32>
    %70 = tpu.concatenate %65, %66, %67, %68, %69 in 1 : vector<4x1x128xf32>, vector<4x1x128xf32>, vector<4x1x128xf32>, vector<4x1x128xf32>, vector<4x1x128xf32> -> vector<4x5x128xf32>
    %c0_41 = arith.constant 0 : index
    %c0_42 = arith.constant 0 : index
    %c0_43 = arith.constant 0 : index
    %71 = vector.load %arg14[%c0_41, %c0_42, %c0_43] : memref<4x5x128xf32, #tpu.memory_space<vmem>>, vector<4x5x128xf32>
    tpu.vector_store %arg14[%c0_41, %c0_42, %c0_43], %70 {strides = array<i32>} : memref<4x5x128xf32, #tpu.memory_space<vmem>>, vector<4x5x128xf32>,
    return
  }
  func.func @transform_0(%arg0: i32) -> (i32, i32, i32) {
    %c0_i32 = arith.constant 0 : i32
    %c0_i32_0 = arith.constant 0 : i32
    %c0_i32_1 = arith.constant 0 : i32
    return %arg0, %c0_i32, %c0_i32_0 : i32, i32, i32
  }
  func.func @transform_1(%arg0: i32) -> (i32, i32, i32) {
    %c0_i32 = arith.constant 0 : i32
    %c0_i32_0 = arith.constant 0 : i32
    %c0_i32_1 = arith.constant 0 : i32
    return %arg0, %c0_i32, %c0_i32_0 : i32, i32, i32
  }
  func.func @transform_2(%arg0: i32) -> (i32, i32) {
    %c0_i32 = arith.constant 0 : i32
    %c0_i32_0 = arith.constant 0 : i32
    %c0_i32_1 = arith.constant 0 : i32
    return %c0_i32, %c0_i32_0 : i32, i32
  }
  func.func @transform_3(%arg0: i32) -> (i32, i32) {
    %c0_i32 = arith.constant 0 : i32
    %c0_i32_0 = arith.constant 0 : i32
    %c0_i32_1 = arith.constant 0 : i32
    return %c0_i32, %c0_i32_0 : i32, i32
  }
  func.func @transform_4(%arg0: i32) -> (i32, i32) {
    %c0_i32 = arith.constant 0 : i32
    %c0_i32_0 = arith.constant 0 : i32
    %c0_i32_1 = arith.constant 0 : i32
    return %c0_i32, %c0_i32_0 : i32, i32
  }
  func.func @transform_5(%arg0: i32) -> (i32, i32) {
    %c0_i32 = arith.constant 0 : i32
    %c0_i32_0 = arith.constant 0 : i32
    %c0_i32_1 = arith.constant 0 : i32
    return %c0_i32, %c0_i32_0 : i32, i32
  }
  func.func @transform_6(%arg0: i32) -> (i32, i32) {
    %c0_i32 = arith.constant 0 : i32
    %c0_i32_0 = arith.constant 0 : i32
    %c0_i32_1 = arith.constant 0 : i32
    return %c0_i32, %c0_i32_0 : i32, i32
  }
  func.func @transform_7(%arg0: i32) -> (i32, i32) {
    %c0_i32 = arith.constant 0 : i32
    %c0_i32_0 = arith.constant 0 : i32
    %c0_i32_1 = arith.constant 0 : i32
    return %c0_i32, %c0_i32_0 : i32, i32
  }
  func.func @transform_8(%arg0: i32) -> (i32, i32, i32) {
    %c0_i32 = arith.constant 0 : i32
    %c0_i32_0 = arith.constant 0 : i32
    %c0_i32_1 = arith.constant 0 : i32
    return %arg0, %c0_i32, %c0_i32_0 : i32, i32, i32
  }
  func.func @transform_9(%arg0: i32) -> (i32, i32, i32) {
    %c0_i32 = arith.constant 0 : i32
    %c0_i32_0 = arith.constant 0 : i32
    %c0_i32_1 = arith.constant 0 : i32
    return %arg0, %c0_i32, %c0_i32_0 : i32, i32, i32
  }
  func.func @transform_10(%arg0: i32) -> (i32, i32, i32) {
    %c0_i32 = arith.constant 0 : i32
    %c0_i32_0 = arith.constant 0 : i32
    %c0_i32_1 = arith.constant 0 : i32
    return %arg0, %c0_i32, %c0_i32_0 : i32, i32, i32
  }
  func.func @transform_11(%arg0: i32) -> (i32, i32, i32) {
    %c0_i32 = arith.constant 0 : i32
    %c0_i32_0 = arith.constant 0 : i32
    %c0_i32_1 = arith.constant 0 : i32
    return %arg0, %c0_i32, %c0_i32_0 : i32, i32, i32
  }
  func.func @transform_12(%arg0: i32) -> (i32, i32, i32) {
    %c0_i32 = arith.constant 0 : i32
    %c0_i32_0 = arith.constant 0 : i32
    %c0_i32_1 = arith.constant 0 : i32
    return %arg0, %c0_i32, %c0_i32_0 : i32, i32, i32
  }
  func.func @transform_13(%arg0: i32) -> (i32, i32, i32) {
    %c0_i32 = arith.constant 0 : i32
    %c0_i32_0 = arith.constant 0 : i32
    %c0_i32_1 = arith.constant 0 : i32
    return %arg0, %c0_i32, %c0_i32_0 : i32, i32, i32
  }
}

module attributes {stable_mosaic.version = 11 : i64} {
  func.func @_enhancer_kernel(%arg0: i32, %arg1: memref<4x16x128xf32, #tpu.memory_space<vmem>>, %arg2: memref<4x16x128xf32, #tpu.memory_space<vmem>>, %arg3: memref<128x128xf32, #tpu.memory_space<vmem>>, %arg4: memref<1x128xf32, #tpu.memory_space<vmem>>, %arg5: memref<128x128xf32, #tpu.memory_space<vmem>>, %arg6: memref<1x128xf32, #tpu.memory_space<vmem>>, %arg7: memref<128x128xf32, #tpu.memory_space<vmem>>, %arg8: memref<1x128xf32, #tpu.memory_space<vmem>>, %arg9: memref<4x16x128xf32, #tpu.memory_space<vmem>>, %arg10: memref<4x16x128xf32, #tpu.memory_space<vmem>>, %arg11: memref<4x16x128xf32, #tpu.memory_space<vmem>>, %arg12: memref<4x16x128xf32, #tpu.memory_space<vmem>>, %arg13: memref<4x16x128xf32, #tpu.memory_space<vmem>>, %arg14: memref<4x5x128xf32, #tpu.memory_space<vmem>>) attributes {dimension_semantics = [#tpu.dimension_semantics<parallel>], iteration_bounds = array<i64: 1>, scalar_prefetch = 0 : i64, scratch_operands = 0 : i64, tpu.core_type = #tpu.core_type<tc>, window_params = [{transform_indices = @transform_0, window_bounds = array<i64: 4, 16, 128>}, {transform_indices = @transform_1, window_bounds = array<i64: 4, 16, 128>}, {pipeline_mode = #tpu.pipeline_mode<synchronous>, transform_indices = @transform_2, window_bounds = array<i64: 128, 128>}, {pipeline_mode = #tpu.pipeline_mode<synchronous>, transform_indices = @transform_3, window_bounds = array<i64: 1, 128>}, {pipeline_mode = #tpu.pipeline_mode<synchronous>, transform_indices = @transform_4, window_bounds = array<i64: 128, 128>}, {pipeline_mode = #tpu.pipeline_mode<synchronous>, transform_indices = @transform_5, window_bounds = array<i64: 1, 128>}, {pipeline_mode = #tpu.pipeline_mode<synchronous>, transform_indices = @transform_6, window_bounds = array<i64: 128, 128>}, {pipeline_mode = #tpu.pipeline_mode<synchronous>, transform_indices = @transform_7, window_bounds = array<i64: 1, 128>}, {transform_indices = @transform_8, window_bounds = array<i64: 4, 16, 128>}, {transform_indices = @transform_9, window_bounds = array<i64: 4, 16, 128>}, {transform_indices = @transform_10, window_bounds = array<i64: 4, 16, 128>}, {transform_indices = @transform_11, window_bounds = array<i64: 4, 16, 128>}, {transform_indices = @transform_12, window_bounds = array<i64: 4, 16, 128>}, {transform_indices = @transform_13, window_bounds = array<i64: 4, 5, 128>}]} {
    %c0 = arith.constant 0 : index
    %c0_0 = arith.constant 0 : index
    %c0_1 = arith.constant 0 : index
    %0 = vector.load %arg1[%c0, %c0_0, %c0_1] : memref<4x16x128xf32, #tpu.memory_space<vmem>>, vector<4x16x128xf32>
    %c0_2 = arith.constant 0 : index
    %c0_3 = arith.constant 0 : index
    %c0_4 = arith.constant 0 : index
    %1 = vector.load %arg2[%c0_2, %c0_3, %c0_4] : memref<4x16x128xf32, #tpu.memory_space<vmem>>, vector<4x16x128xf32>
    %2 = vector.shape_cast %0 : vector<4x16x128xf32> to vector<64x128xf32>
    %c0_5 = arith.constant 0 : index
    %c0_6 = arith.constant 0 : index
    %3 = vector.load %arg3[%c0_5, %c0_6] : memref<128x128xf32, #tpu.memory_space<vmem>>, vector<128x128xf32>
    %cst = arith.constant dense<0.000000e+00> : vector<64x128xf32>
    %4 = tpu.matmul %2, %3, %cst {dimension_numbers = #tpu.dot_dimension_numbers<[1], [0], [0], [1], [0, 0, 1, 1], [], []>} : vector<64x128xf32>, vector<128x128xf32>, vector<64x128xf32> -> vector<64x128xf32>
    %c0_7 = arith.constant 0 : index
    %c0_8 = arith.constant 0 : index
    %5 = vector.load %arg4[%c0_7, %c0_8] : memref<1x128xf32, #tpu.memory_space<vmem>>, vector<1x128xf32>
    %6 = vector.broadcast %5 : vector<1x128xf32> to vector<64x128xf32>
    %7 = arith.addf %4, %6 : vector<64x128xf32>
    %8 = vector.shape_cast %1 : vector<4x16x128xf32> to vector<64x128xf32>
    %c0_9 = arith.constant 0 : index
    %c0_10 = arith.constant 0 : index
    %9 = vector.load %arg5[%c0_9, %c0_10] : memref<128x128xf32, #tpu.memory_space<vmem>>, vector<128x128xf32>
    %cst_11 = arith.constant dense<0.000000e+00> : vector<64x128xf32>
    %10 = tpu.matmul %8, %9, %cst_11 {dimension_numbers = #tpu.dot_dimension_numbers<[1], [0], [0], [1], [0, 0, 1, 1], [], []>} : vector<64x128xf32>, vector<128x128xf32>, vector<64x128xf32> -> vector<64x128xf32>
    %c0_12 = arith.constant 0 : index
    %c0_13 = arith.constant 0 : index
    %11 = vector.load %arg6[%c0_12, %c0_13] : memref<1x128xf32, #tpu.memory_space<vmem>>, vector<1x128xf32>
    %12 = vector.broadcast %11 : vector<1x128xf32> to vector<64x128xf32>
    %13 = arith.addf %10, %12 : vector<64x128xf32>
    %14 = vector.shape_cast %7 : vector<64x128xf32> to vector<4x16x128xf32>
    %15 = vector.shape_cast %13 : vector<64x128xf32> to vector<4x16x128xf32>
    %cst_14 = arith.constant dense<0xFF800000> : vector<4x128xf32>
    %16 = vector.multi_reduction <maximumf>, %14, %cst_14 [1] : vector<4x16x128xf32> to vector<4x128xf32>
    %cst_15 = arith.constant dense<0.000000e+00> : vector<4x128xf32>
    %17 = vector.multi_reduction <add>, %14, %cst_15 [1] : vector<4x16x128xf32> to vector<4x128xf32>
    %cst_16 = arith.constant 1.600000e+01 : f32
    %18 = vector.broadcast %cst_16 : f32 to vector<4x128xf32>
    %19 = arith.divf %17, %18 : vector<4x128xf32>
    %20 = arith.addf %16, %19 : vector<4x128xf32>
    %cst_17 = arith.constant dense<0.000000e+00> : vector<4x128xf32>
    %21 = vector.multi_reduction <add>, %15, %cst_17 [1] : vector<4x16x128xf32> to vector<4x128xf32>
    %cst_18 = arith.constant 1.600000e+01 : f32
    %22 = vector.broadcast %cst_18 : f32 to vector<4x128xf32>
    %23 = arith.divf %21, %22 : vector<4x128xf32>
    %24 = tpu.concatenate %20, %23 in 0 : vector<4x128xf32>, vector<4x128xf32> -> vector<8x128xf32>
    %c0_19 = arith.constant 0 : index
    %c0_20 = arith.constant 0 : index
    %25 = vector.load %arg7[%c0_19, %c0_20] : memref<128x128xf32, #tpu.memory_space<vmem>>, vector<128x128xf32>
    %cst_21 = arith.constant dense<0.000000e+00> : vector<8x128xf32>
    %26 = tpu.matmul %24, %25, %cst_21 {dimension_numbers = #tpu.dot_dimension_numbers<[1], [0], [0], [1], [0, 0, 1, 1], [], []>} : vector<8x128xf32>, vector<128x128xf32>, vector<8x128xf32> -> vector<8x128xf32>
    %c0_22 = arith.constant 0 : index
    %c0_23 = arith.constant 0 : index
    %27 = vector.load %arg8[%c0_22, %c0_23] : memref<1x128xf32, #tpu.memory_space<vmem>>, vector<1x128xf32>
    %28 = vector.broadcast %27 : vector<1x128xf32> to vector<8x128xf32>
    %29 = arith.addf %26, %28 : vector<8x128xf32>
    %30 = arith.negf %29 : vector<8x128xf32>
    %31 = math.exp %30 : vector<8x128xf32>
    %cst_24 = arith.constant 1.000000e+00 : f32
    %32 = vector.broadcast %cst_24 : f32 to vector<8x128xf32>
    %33 = arith.addf %32, %31 : vector<8x128xf32>
    %34 = arith.divf %32, %33 : vector<8x128xf32>
    %35 = vector.extract_strided_slice %34 {offsets = [0, 0], sizes = [4, 128], strides = [1, 1]} : vector<8x128xf32> to vector<4x128xf32>
    %36 = vector.extract_strided_slice %34 {offsets = [4, 0], sizes = [4, 128], strides = [1, 1]} : vector<8x128xf32> to vector<4x128xf32>
    %37 = arith.maximumf %35, %36 : vector<4x128xf32>
    %38 = arith.subf %35, %37 : vector<4x128xf32>
    %39 = math.exp %38 : vector<4x128xf32>
    %40 = arith.subf %36, %37 : vector<4x128xf32>
    %41 = math.exp %40 : vector<4x128xf32>
    %42 = arith.addf %39, %41 : vector<4x128xf32>
    %cst_25 = arith.constant 1.000000e+00 : f32
    %43 = vector.broadcast %cst_25 : f32 to vector<4x128xf32>
    %44 = arith.divf %43, %42 : vector<4x128xf32>
    %45 = arith.mulf %39, %44 : vector<4x128xf32>
    %46 = arith.mulf %41, %44 : vector<4x128xf32>
    %47 = vector.shape_cast %35 : vector<4x128xf32> to vector<4x1x128xf32>
    %48 = vector.broadcast %47 : vector<4x1x128xf32> to vector<4x16x128xf32>
    %49 = arith.mulf %0, %48 : vector<4x16x128xf32>
    %50 = vector.shape_cast %36 : vector<4x128xf32> to vector<4x1x128xf32>
    %51 = vector.broadcast %50 : vector<4x1x128xf32> to vector<4x16x128xf32>
    %52 = arith.mulf %1, %51 : vector<4x16x128xf32>
    %53 = vector.shape_cast %45 : vector<4x128xf32> to vector<4x1x128xf32>
    %54 = vector.broadcast %53 : vector<4x1x128xf32> to vector<4x16x128xf32>
    %55 = arith.mulf %49, %54 : vector<4x16x128xf32>
    %56 = vector.shape_cast %46 : vector<4x128xf32> to vector<4x1x128xf32>
    %57 = vector.broadcast %56 : vector<4x1x128xf32> to vector<4x16x128xf32>
    %58 = arith.mulf %52, %57 : vector<4x16x128xf32>
    %59 = arith.addf %55, %58 : vector<4x16x128xf32>
    %c0_26 = arith.constant 0 : index
    %c0_27 = arith.constant 0 : index
    %c0_28 = arith.constant 0 : index
    %60 = vector.load %arg9[%c0_26, %c0_27, %c0_28] : memref<4x16x128xf32, #tpu.memory_space<vmem>>, vector<4x16x128xf32>
    tpu.vector_store %arg9[%c0_26, %c0_27, %c0_28], %59 {strides = array<i32>} : memref<4x16x128xf32, #tpu.memory_space<vmem>>, vector<4x16x128xf32>,
    %c0_29 = arith.constant 0 : index
    %c0_30 = arith.constant 0 : index
    %c0_31 = arith.constant 0 : index
    %61 = vector.load %arg10[%c0_29, %c0_30, %c0_31] : memref<4x16x128xf32, #tpu.memory_space<vmem>>, vector<4x16x128xf32>
    tpu.vector_store %arg10[%c0_29, %c0_30, %c0_31], %52 {strides = array<i32>} : memref<4x16x128xf32, #tpu.memory_space<vmem>>, vector<4x16x128xf32>,
    %c0_32 = arith.constant 0 : index
    %c0_33 = arith.constant 0 : index
    %c0_34 = arith.constant 0 : index
    %62 = vector.load %arg11[%c0_32, %c0_33, %c0_34] : memref<4x16x128xf32, #tpu.memory_space<vmem>>, vector<4x16x128xf32>
    tpu.vector_store %arg11[%c0_32, %c0_33, %c0_34], %58 {strides = array<i32>} : memref<4x16x128xf32, #tpu.memory_space<vmem>>, vector<4x16x128xf32>,
    %c0_35 = arith.constant 0 : index
    %c0_36 = arith.constant 0 : index
    %c0_37 = arith.constant 0 : index
    %63 = vector.load %arg12[%c0_35, %c0_36, %c0_37] : memref<4x16x128xf32, #tpu.memory_space<vmem>>, vector<4x16x128xf32>
    tpu.vector_store %arg12[%c0_35, %c0_36, %c0_37], %49 {strides = array<i32>} : memref<4x16x128xf32, #tpu.memory_space<vmem>>, vector<4x16x128xf32>,
    %c0_38 = arith.constant 0 : index
    %c0_39 = arith.constant 0 : index
    %c0_40 = arith.constant 0 : index
    %64 = vector.load %arg13[%c0_38, %c0_39, %c0_40] : memref<4x16x128xf32, #tpu.memory_space<vmem>>, vector<4x16x128xf32>
    tpu.vector_store %arg13[%c0_38, %c0_39, %c0_40], %55 {strides = array<i32>} : memref<4x16x128xf32, #tpu.memory_space<vmem>>, vector<4x16x128xf32>,
    %65 = vector.shape_cast %36 : vector<4x128xf32> to vector<4x1x128xf32>
    %66 = vector.shape_cast %46 : vector<4x128xf32> to vector<4x1x128xf32>
    %67 = vector.shape_cast %35 : vector<4x128xf32> to vector<4x1x128xf32>
    %68 = vector.shape_cast %45 : vector<4x128xf32> to vector<4x1x128xf32>
    %69 = vector.shape_cast %20 : vector<4x128xf32> to vector<4x1x128xf32>
    %70 = tpu.concatenate %65, %66, %67, %68, %69 in 1 : vector<4x1x128xf32>, vector<4x1x128xf32>, vector<4x1x128xf32>, vector<4x1x128xf32>, vector<4x1x128xf32> -> vector<4x5x128xf32>
    %c0_41 = arith.constant 0 : index
    %c0_42 = arith.constant 0 : index
    %c0_43 = arith.constant 0 : index
    %71 = vector.load %arg14[%c0_41, %c0_42, %c0_43] : memref<4x5x128xf32, #tpu.memory_space<vmem>>, vector<4x5x128xf32>
    tpu.vector_store %arg14[%c0_41, %c0_42, %c0_43], %70 {strides = array<i32>} : memref<4x5x128xf32, #tpu.memory_space<vmem>>, vector<4x5x128xf32>,
    return
  }
  func.func @transform_0(%arg0: i32) -> (i32, i32, i32) {
    %c0_i32 = arith.constant 0 : i32
    %c0_i32_0 = arith.constant 0 : i32
    %c0_i32_1 = arith.constant 0 : i32
    return %arg0, %c0_i32, %c0_i32_0 : i32, i32, i32
  }
  func.func @transform_1(%arg0: i32) -> (i32, i32, i32) {
    %c0_i32 = arith.constant 0 : i32
    %c0_i32_0 = arith.constant 0 : i32
    %c0_i32_1 = arith.constant 0 : i32
    return %arg0, %c0_i32, %c0_i32_0 : i32, i32, i32
  }
  func.func @transform_2(%arg0: i32) -> (i32, i32) {
    %c0_i32 = arith.constant 0 : i32
    %c0_i32_0 = arith.constant 0 : i32
    %c0_i32_1 = arith.constant 0 : i32
    return %c0_i32, %c0_i32_0 : i32, i32
  }
  func.func @transform_3(%arg0: i32) -> (i32, i32) {
    %c0_i32 = arith.constant 0 : i32
    %c0_i32_0 = arith.constant 0 : i32
    %c0_i32_1 = arith.constant 0 : i32
    return %c0_i32, %c0_i32_0 : i32, i32
  }
  func.func @transform_4(%arg0: i32) -> (i32, i32) {
    %c0_i32 = arith.constant 0 : i32
    %c0_i32_0 = arith.constant 0 : i32
    %c0_i32_1 = arith.constant 0 : i32
    return %c0_i32, %c0_i32_0 : i32, i32
  }
  func.func @transform_5(%arg0: i32) -> (i32, i32) {
    %c0_i32 = arith.constant 0 : i32
    %c0_i32_0 = arith.constant 0 : i32
    %c0_i32_1 = arith.constant 0 : i32
    return %c0_i32, %c0_i32_0 : i32, i32
  }
  func.func @transform_6(%arg0: i32) -> (i32, i32) {
    %c0_i32 = arith.constant 0 : i32
    %c0_i32_0 = arith.constant 0 : i32
    %c0_i32_1 = arith.constant 0 : i32
    return %c0_i32, %c0_i32_0 : i32, i32
  }
  func.func @transform_7(%arg0: i32) -> (i32, i32) {
    %c0_i32 = arith.constant 0 : i32
    %c0_i32_0 = arith.constant 0 : i32
    %c0_i32_1 = arith.constant 0 : i32
    return %c0_i32, %c0_i32_0 : i32, i32
  }
  func.func @transform_8(%arg0: i32) -> (i32, i32, i32) {
    %c0_i32 = arith.constant 0 : i32
    %c0_i32_0 = arith.constant 0 : i32
    %c0_i32_1 = arith.constant 0 : i32
    return %arg0, %c0_i32, %c0_i32_0 : i32, i32, i32
  }
  func.func @transform_9(%arg0: i32) -> (i32, i32, i32) {
    %c0_i32 = arith.constant 0 : i32
    %c0_i32_0 = arith.constant 0 : i32
    %c0_i32_1 = arith.constant 0 : i32
    return %arg0, %c0_i32, %c0_i32_0 : i32, i32, i32
  }
  func.func @transform_10(%arg0: i32) -> (i32, i32, i32) {
    %c0_i32 = arith.constant 0 : i32
    %c0_i32_0 = arith.constant 0 : i32
    %c0_i32_1 = arith.constant 0 : i32
    return %arg0, %c0_i32, %c0_i32_0 : i32, i32, i32
  }
  func.func @transform_11(%arg0: i32) -> (i32, i32, i32) {
    %c0_i32 = arith.constant 0 : i32
    %c0_i32_0 = arith.constant 0 : i32
    %c0_i32_1 = arith.constant 0 : i32
    return %arg0, %c0_i32, %c0_i32_0 : i32, i32, i32
  }
  func.func @transform_12(%arg0: i32) -> (i32, i32, i32) {
    %c0_i32 = arith.constant 0 : i32
    %c0_i32_0 = arith.constant 0 : i32
    %c0_i32_1 = arith.constant 0 : i32
    return %arg0, %c0_i32, %c0_i32_0 : i32, i32, i32
  }
  func.func @transform_13(%arg0: i32) -> (i32, i32, i32) {
    %c0_i32 = arith.constant 0 : i32
    %c0_i32_0 = arith.constant 0 : i32
    %c0_i32_1 = arith.constant 0 : i32
    return %arg0, %c0_i32, %c0_i32_0 : i32, i32, i32
  }
}

</mosaic_0001>

<llo_original>
// kernel: tpu_custom_call.1
$region0: #{tpu_custom_call.1}
  #allocation0 [shape = 'u32[]', space=smem, size = 0x4, offset = 0x4, fixed_abs, tag = 'smem constant byte address 0x4 - core index']
  #allocation1 [shape = 'u32[144,128]{1,0:T(1,128)}', space=vmem, size = 0x12000, scoped, tag = 'internal scratch']
  %s0 = inlined_call_operand.hbm [shape: f32[4,16,128], index: 0, kind: input, shape index: {}]
  %s1 = inlined_call_operand.hbm [shape: f32[4,16,128], index: 1, kind: input, shape index: {}]
  %s2 = inlined_call_operand.hbm [shape: f32[128,128], index: 2, kind: input, shape index: {}]
  %s3 = inlined_call_operand.vmem [shape: f32[1,128], index: 3, kind: input, shape index: {}]
  %s4 = inlined_call_operand.hbm [shape: f32[128,128], index: 4, kind: input, shape index: {}]
  %s5 = inlined_call_operand.vmem [shape: f32[1,128], index: 5, kind: input, shape index: {}]
  %s6 = inlined_call_operand.hbm [shape: f32[128,128], index: 6, kind: input, shape index: {}]
  %s7 = inlined_call_operand.vmem [shape: f32[1,128], index: 7, kind: input, shape index: {}]
  %s8 = inlined_call_operand.hbm [shape: f32[4,16,128], index: 8, kind: output, shape index: {0}]
  %s9 = inlined_call_operand.hbm [shape: f32[4,16,128], index: 9, kind: output, shape index: {1}]
  %s10 = inlined_call_operand.hbm [shape: f32[4,16,128], index: 10, kind: output, shape index: {2}]
  %s11 = inlined_call_operand.hbm [shape: f32[4,16,128], index: 11, kind: output, shape index: {3}]
  %s12 = inlined_call_operand.hbm [shape: f32[4,16,128], index: 12, kind: output, shape index: {4}]
  %s13 = inlined_call_operand.vmem [shape: f32[4,5,128], index: 13, kind: output, shape index: {5}]
  %14 = xla_tuple %s8, %s9, %s10, %s11, %s12, %s13
  %s15 = sld [smem:[#allocation0]]
  $region102: #{tpu_custom_call.1} parent=0
    _
  %s17 = ssub.s32 1, %s15
  %s18 = scalar_select 0, %s17, %s15
  $region1: #{tpu_custom_call.1} parent=0
    #allocation2 [shape = 'u8[32768]{0}', space=vmem, size = 0x8000, scoped, tag = 'input window, operand 0, single buffered']
    #allocation3 [shape = 's32[1]{0}', space=sflag, size = 0x4, scoped, tag = 'scoped memory for tpu_custom_call.1']
    #allocation4 [shape = 's32[1]{0}', space=sflag, size = 0x4, scoped, tag = 'scoped memory for tpu_custom_call.1']
    #allocation5 [shape = 'u8[32768]{0}', space=vmem, size = 0x8000, scoped, tag = 'input window, operand 1, single buffered']
    #allocation6 [shape = 's32[1]{0}', space=sflag, size = 0x4, scoped, tag = 'scoped memory for tpu_custom_call.1']
    #allocation7 [shape = 'u8[65536]{0}', space=vmem, size = 0x10000, scoped, tag = 'input window, operand 2, single buffered']
    #allocation8 [shape = 'u8[65536]{0}', space=vmem, size = 0x10000, scoped, tag = 'input window, operand 4, single buffered']
    #allocation9 [shape = 's32[1]{0}', space=sflag, size = 0x4, scoped, tag = 'scoped memory for tpu_custom_call.1']
    #allocation10 [shape = 'u8[65536]{0}', space=vmem, size = 0x10000, scoped, tag = 'input window, operand 6, single buffered']
    #allocation11 [shape = 'u8[32768]{0}', space=vmem, size = 0x8000, scoped, tag = 'output window, operand 0, single buffered']
    #allocation12 [shape = 'u8[32768]{0}', space=vmem, size = 0x8000, scoped, tag = 'output window, operand 1, single buffered']
    #allocation13 [shape = 's32[1]{0}', space=sflag, size = 0x4, scoped, tag = 'scoped memory for tpu_custom_call.1']
    #allocation14 [shape = 'u8[32768]{0}', space=vmem, size = 0x8000, scoped, tag = 'output window, operand 2, single buffered']
    #allocation15 [shape = 'u8[32768]{0}', space=vmem, size = 0x8000, scoped, tag = 'output window, operand 3, single buffered']
    #allocation16 [shape = 's32[1]{0}', space=sflag, size = 0x4, scoped, tag = 'scoped memory for tpu_custom_call.1']
    #allocation17 [shape = 'u8[32768]{0}', space=vmem, size = 0x8000, scoped, tag = 'output window, operand 4, single buffered']
    %19 = vsyncpa [#allocation3], 0
    %20 = vsyncpa [#allocation6], 0
    %21 = vsyncpa [#allocation9], 0
    %22 = vsyncpa [#allocation4], 0
    %23 = vsyncpa [#allocation13], 0
    %24 = vsyncpa [#allocation16], 0
    // Predicated region
    $region2: #{tpu_custom_call.1} parent=1 // pred_check
      _
    $region3: #{tpu_custom_call.1} parent=1 // pred_check_branch
      %26 = sbr.rel (0) target = $region5
    $region4: #{tpu_custom_call.1} parent=1 // pred_region
      %s28 = ssub.s32 1024, 1024
      %29 = vsyncadd [#allocation3], %s28
      %s30 = sshll.u32 [#allocation2], 4
      %s31 = int_to_ptr.vmem [resolvable:$true] %s30
      %36 = dma.hbm_to_vmem [thread:$0]  %s0, 1024, %s31, [#allocation3], 128, 128, 8
    $region5: #{tpu_custom_call.1} parent=1 // pred_fallthru
      _
    // Predicated region
    $region6: #{tpu_custom_call.1} parent=1 // pred_check
      _
    $region7: #{tpu_custom_call.1} parent=1 // pred_check_branch
      %38 = sbr.rel (0) target = $region9
    $region8: #{tpu_custom_call.1} parent=1 // pred_region
      %s40 = ssub.s32 1024, 1024
      %41 = vsyncadd [#allocation6], %s40
      %s42 = sshll.u32 [#allocation5], 4
      %s43 = int_to_ptr.vmem [resolvable:$true] %s42
      %48 = dma.hbm_to_vmem [thread:$0]  %s1, 1024, %s43, [#allocation6], 128, 128, 8
    $region9: #{tpu_custom_call.1} parent=1 // pred_fallthru
      _
    // Predicated region
    $region10: #{tpu_custom_call.1} parent=1 // pred_check
      _
    $region11: #{tpu_custom_call.1} parent=1 // pred_check_branch
      %50 = sbr.rel (0) target = $region13
    $region12: #{tpu_custom_call.1} parent=1 // pred_region
      %s52 = ssub.s32 2048, 2048
      %53 = vsyncadd [#allocation6], %s52
      %s54 = sshll.u32 [#allocation7], 4
      %s55 = int_to_ptr.vmem [resolvable:$true] %s54
      %60 = dma.hbm_to_vmem [thread:$0]  %s2, 2048, %s55, [#allocation6], 128, 128, 8
    $region13: #{tpu_custom_call.1} parent=1 // pred_fallthru
      _
    // Predicated region
    $region14: #{tpu_custom_call.1} parent=1 // pred_check
      _
    $region15: #{tpu_custom_call.1} parent=1 // pred_check_branch
      %62 = sbr.rel (0) target = $region17
    $region16: #{tpu_custom_call.1} parent=1 // pred_region
      _
    $region17: #{tpu_custom_call.1} parent=1 // pred_fallthru
      _
    // Predicated region
    $region18: #{tpu_custom_call.1} parent=1 // pred_check
      _
    $region19: #{tpu_custom_call.1} parent=1 // pred_check_branch
      %64 = sbr.rel (0) target = $region21
    $region20: #{tpu_custom_call.1} parent=1 // pred_region
      %s66 = ssub.s32 2048, 2048
      %67 = vsyncadd [#allocation9], %s66
      %s68 = sshll.u32 [#allocation8], 4
      %s69 = int_to_ptr.vmem [resolvable:$true] %s68
      %74 = dma.hbm_to_vmem [thread:$0]  %s4, 2048, %s69, [#allocation9], 128, 128, 8
    $region21: #{tpu_custom_call.1} parent=1 // pred_fallthru
      _
    // Predicated region
    $region22: #{tpu_custom_call.1} parent=1 // pred_check
      _
    $region23: #{tpu_custom_call.1} parent=1 // pred_check_branch
      %76 = sbr.rel (0) target = $region25
    $region24: #{tpu_custom_call.1} parent=1 // pred_region
      _
    $region25: #{tpu_custom_call.1} parent=1 // pred_fallthru
      _
    // Predicated region
    $region26: #{tpu_custom_call.1} parent=1 // pred_check
      _
    $region27: #{tpu_custom_call.1} parent=1 // pred_check_branch
      %78 = sbr.rel (0) target = $region29
    $region28: #{tpu_custom_call.1} parent=1 // pred_region
      %s80 = ssub.s32 2048, 2048
      %81 = vsyncadd [#allocation9], %s80
      %s82 = sshll.u32 [#allocation10], 4
      %s83 = int_to_ptr.vmem [resolvable:$true] %s82
      %88 = dma.hbm_to_vmem [thread:$0]  %s6, 2048, %s83, [#allocation9], 128, 128, 8
    $region29: #{tpu_custom_call.1} parent=1 // pred_fallthru
      _
    // Predicated region
    $region30: #{tpu_custom_call.1} parent=1 // pred_check
      _
    $region31: #{tpu_custom_call.1} parent=1 // pred_check_branch
      %90 = sbr.rel (0) target = $region33
    $region32: #{tpu_custom_call.1} parent=1 // pred_region
      _
    $region33: #{tpu_custom_call.1} parent=1 // pred_fallthru
      _
    // Predicated region
    $region34: #{tpu_custom_call.1} parent=1 // pred_check
      _
    $region35: #{tpu_custom_call.1} parent=1 // pred_check_branch
      %92 = sbr.rel (0) target = $region37
    $region36: #{tpu_custom_call.1} parent=1 // pred_region
      %93 = dma.done [#allocation3], 1024
    $region37: #{tpu_custom_call.1} parent=1 // pred_fallthru
      _
    // Predicated region
    $region38: #{tpu_custom_call.1} parent=1 // pred_check
      _
    $region39: #{tpu_custom_call.1} parent=1 // pred_check_branch
      %95 = sbr.rel (0) target = $region41
    $region40: #{tpu_custom_call.1} parent=1 // pred_region
      %96 = dma.done [#allocation6], 1024
    $region41: #{tpu_custom_call.1} parent=1 // pred_fallthru
      _
    // Predicated region
    $region42: #{tpu_custom_call.1} parent=1 // pred_check
      _
    $region43: #{tpu_custom_call.1} parent=1 // pred_check_branch
      %98 = sbr.rel (0) target = $region45
    $region44: #{tpu_custom_call.1} parent=1 // pred_region
      %99 = dma.done [#allocation6], 2048
    $region45: #{tpu_custom_call.1} parent=1 // pred_fallthru
      _
    // Predicated region
    $region46: #{tpu_custom_call.1} parent=1 // pred_check
      _
    $region47: #{tpu_custom_call.1} parent=1 // pred_check_branch
      %101 = sbr.rel (0) target = $region49
    $region48: #{tpu_custom_call.1} parent=1 // pred_region
      %102 = dma.done [#allocation9], 2048
    $region49: #{tpu_custom_call.1} parent=1 // pred_fallthru
      _
    // Predicated region
    $region50: #{tpu_custom_call.1} parent=1 // pred_check
      _
    $region51: #{tpu_custom_call.1} parent=1 // pred_check_branch
      %104 = sbr.rel (0) target = $region53
    $region52: #{tpu_custom_call.1} parent=1 // pred_region
      %105 = dma.done [#allocation9], 2048
    $region53: #{tpu_custom_call.1} parent=1 // pred_fallthru
      _
    %v106 = vld [vmem:[#allocation2] sm:$0xff]
    %v107 = vld [vmem:[#allocation2 + $0x8] sm:$0xff]
    %v108 = vld [vmem:[#allocation2 + $0x10] sm:$0xff]
    %v109 = vld [vmem:[#allocation2 + $0x18] sm:$0xff]
    %v110 = vld [vmem:[#allocation2 + $0x20] sm:$0xff]
    %v111 = vld [vmem:[#allocation2 + $0x28] sm:$0xff]
    %v112 = vld [vmem:[#allocation2 + $0x30] sm:$0xff]
    %v113 = vld [vmem:[#allocation2 + $0x38] sm:$0xff]
    %v114 = vld [vmem:[#allocation5] sm:$0xff]
    %v115 = vld [vmem:[#allocation5 + $0x8] sm:$0xff]
    %v116 = vld [vmem:[#allocation5 + $0x10] sm:$0xff]
    %v117 = vld [vmem:[#allocation5 + $0x18] sm:$0xff]
    %v118 = vld [vmem:[#allocation5 + $0x20] sm:$0xff]
    %v119 = vld [vmem:[#allocation5 + $0x28] sm:$0xff]
    %v120 = vld [vmem:[#allocation5 + $0x30] sm:$0xff]
    %v121 = vld [vmem:[#allocation5 + $0x38] sm:$0xff]
    %v122 = vld [vmem:[#allocation7] sm:$0xff]
    %v123 = vld [vmem:[#allocation7 + $0x8] sm:$0xff]
    %v124 = vld [vmem:[#allocation7 + $0x10] sm:$0xff]
    %v125 = vld [vmem:[#allocation7 + $0x18] sm:$0xff]
    %v126 = vld [vmem:[#allocation7 + $0x20] sm:$0xff]
    %v127 = vld [vmem:[#allocation7 + $0x28] sm:$0xff]
    %v128 = vld [vmem:[#allocation7 + $0x30] sm:$0xff]
    %v129 = vld [vmem:[#allocation7 + $0x38] sm:$0xff]
    %v130 = vld [vmem:[#allocation7 + $0x40] sm:$0xff]
    %v131 = vld [vmem:[#allocation7 + $0x48] sm:$0xff]
    %v132 = vld [vmem:[#allocation7 + $0x50] sm:$0xff]
    %v133 = vld [vmem:[#allocation7 + $0x58] sm:$0xff]
    %v134 = vld [vmem:[#allocation7 + $0x60] sm:$0xff]
    %v135 = vld [vmem:[#allocation7 + $0x68] sm:$0xff]
    %v136 = vld [vmem:[#allocation7 + $0x70] sm:$0xff]
    %v137 = vld [vmem:[#allocation7 + $0x78] sm:$0xff]
    %v138 = vld [vmem:[%s3] sm:$0x1]
    %v140 = vlaneseq
    %v141 = vshrl.u32 %v140, 7
    %v142 = vsub.s32 0, %v141
    %v143 = vrot.slane %v138, %v142
    %145 = vmatprep.subr.mxu0 0.0
    %146 = vmatpush1.msra.mxu0 %v137
    %147 = vmatprep.subr.mxu0 0.0
    %148 = vmatpush1.msra.mxu0 %v136
    %149 = vmatprep.subr.mxu0 0.0
    %150 = vmatpush1.msra.mxu0 %v135
    %151 = vmatprep.subr.mxu0 0.0
    %152 = vmatpush1.msra.mxu0 %v134
    %153 = vmatprep.subr.mxu0 0.0
    %154 = vmatpush1.msra.mxu0 %v133
    %155 = vmatprep.subr.mxu0 0.0
    %156 = vmatpush1.msra.mxu0 %v132
    %157 = vmatprep.subr.mxu0 0.0
    %158 = vmatpush1.msra.mxu0 %v131
    %159 = vmatprep.subr.mxu0 0.0
    %160 = vmatpush1.msra.mxu0 %v130
    %161 = vmatprep.subr.mxu0 0.0
    %162 = vmatpush1.msra.mxu0 %v129
    %163 = vmatprep.subr.mxu0 0.0
    %164 = vmatpush1.msra.mxu0 %v128
    %165 = vmatprep.subr.mxu0 0.0
    %166 = vmatpush1.msra.mxu0 %v127
    %167 = vmatprep.subr.mxu0 0.0
    %168 = vmatpush1.msra.mxu0 %v126
    %169 = vmatprep.subr.mxu0 0.0
    %170 = vmatpush1.msra.mxu0 %v125
    %171 = vmatprep.subr.mxu0 0.0
    %172 = vmatpush1.msra.mxu0 %v124
    %173 = vmatprep.subr.mxu0 0.0
    %174 = vmatpush1.msra.mxu0 %v123
    %175 = vmatprep.subr.mxu0 0.0
    %176 = vmatpush1.msra.mxu0 %v122
    %177 = vmatprep.subr.mxu0 0.0
    %178 = vmatpush2.msra.mxu0 0.0
    %179 = vmatprep.subr.mxu0 0.0
    %180 = vmatpush2.msra.mxu0 0.0
    %181 = vmatprep.subr.mxu0 0.0
    %182 = vmatpush2.msra.mxu0 0.0
    %183 = vmatprep.subr.mxu0 0.0
    %184 = vmatpush2.msra.mxu0 0.0
    %185 = vmatprep.subr.mxu0 0.0
    %186 = vmatpush2.msra.mxu0 0.0
    %187 = vmatprep.subr.mxu0 0.0
    %188 = vmatpush2.msra.mxu0 0.0
    %189 = vmatprep.subr.mxu0 0.0
    %190 = vmatpush2.msra.mxu0 0.0
    %191 = vmatprep.subr.mxu0 0.0
    %192 = vmatpush2.msra.mxu0 0.0
    %193 = vmatprep.subr.mxu0 0.0
    %194 = vmatpush2.msra.mxu0 0.0
    %195 = vmatprep.subr.mxu0 0.0
    %196 = vmatpush2.msra.mxu0 0.0
    %197 = vmatprep.subr.mxu0 0.0
    %198 = vmatpush2.msra.mxu0 0.0
    %199 = vmatprep.subr.mxu0 0.0
    %200 = vmatpush2.msra.mxu0 0.0
    %201 = vmatprep.subr.mxu0 0.0
    %202 = vmatpush2.msra.mxu0 0.0
    %203 = vmatprep.subr.mxu0 0.0
    %204 = vmatpush2.msra.mxu0 0.0
    %205 = vmatprep.subr.mxu0 0.0
    %206 = vmatpush2.msra.mxu0 0.0
    %207 = vmatprep.subr.mxu0 0.0
    %208 = vmatpush2.msra.mxu0 0.0
    %209 = vmatprep.mubr.f32.mxu0 0.0
    %210 = vmatmul.mubr.f32.gmra.mxu0 %v106
    %v211 = vpop.f32.mrf.mxu0
    %v212 = vadd.f32 %v143, %v211
    %v213 = vpop.f32.mrf.mxu0
    %214 = vmatprep.mubr.f32.mxu0 0.0
    %215 = vmatmul.mubr.f32.gmra.mxu0 %v107
    %v216 = vpop.f32.mrf.mxu0
    %v217 = vadd.f32 %v143, %v216
    %v218 = vpop.f32.mrf.mxu0
    %219 = vmatprep.mubr.f32.mxu0 0.0
    %220 = vmatmul.mubr.f32.gmra.mxu0 %v108
    %v221 = vpop.f32.mrf.mxu0
    %v222 = vadd.f32 %v143, %v221
    %v223 = vpop.f32.mrf.mxu0
    %224 = vmatprep.mubr.f32.mxu0 0.0
    %225 = vmatmul.mubr.f32.gmra.mxu0 %v109
    %v226 = vpop.f32.mrf.mxu0
    %v227 = vadd.f32 %v143, %v226
    %v228 = vpop.f32.mrf.mxu0
    %229 = vmatprep.mubr.f32.mxu0 0.0
    %230 = vmatmul.mubr.f32.gmra.mxu0 %v110
    %v231 = vpop.f32.mrf.mxu0
    %v232 = vadd.f32 %v143, %v231
    %v233 = vpop.f32.mrf.mxu0
    %234 = vmatprep.mubr.f32.mxu0 0.0
    %235 = vmatmul.mubr.f32.gmra.mxu0 %v111
    %v236 = vpop.f32.mrf.mxu0
    %v237 = vadd.f32 %v143, %v236
    %v238 = vpop.f32.mrf.mxu0
    %239 = vmatprep.mubr.f32.mxu0 0.0
    %240 = vmatmul.mubr.f32.gmra.mxu0 %v112
    %v241 = vpop.f32.mrf.mxu0
    %v242 = vadd.f32 %v143, %v241
    %v243 = vpop.f32.mrf.mxu0
    %244 = vmatprep.mubr.f32.mxu0 0.0
    %245 = vmatmul.mubr.f32.gmra.mxu0 %v113
    %v246 = vpop.f32.mrf.mxu0
    %v247 = vadd.f32 %v143, %v246
    %v248 = vpop.f32.mrf.mxu0
    %249 = vdwg.mxu0
    %v250 = vld [vmem:[#allocation8] sm:$0xff]
    %v251 = vld [vmem:[#allocation8 + $0x8] sm:$0xff]
    %v252 = vld [vmem:[#allocation8 + $0x10] sm:$0xff]
    %v253 = vld [vmem:[#allocation8 + $0x18] sm:$0xff]
    %v254 = vld [vmem:[#allocation8 + $0x20] sm:$0xff]
    %v255 = vld [vmem:[#allocation8 + $0x28] sm:$0xff]
    %v256 = vld [vmem:[#allocation8 + $0x30] sm:$0xff]
    %v257 = vld [vmem:[#allocation8 + $0x38] sm:$0xff]
    %v258 = vld [vmem:[#allocation8 + $0x40] sm:$0xff]
    %v259 = vld [vmem:[#allocation8 + $0x48] sm:$0xff]
    %v260 = vld [vmem:[#allocation8 + $0x50] sm:$0xff]
    %v261 = vld [vmem:[#allocation8 + $0x58] sm:$0xff]
    %v262 = vld [vmem:[#allocation8 + $0x60] sm:$0xff]
    %v263 = vld [vmem:[#allocation8 + $0x68] sm:$0xff]
    %v264 = vld [vmem:[#allocation8 + $0x70] sm:$0xff]
    %v265 = vld [vmem:[#allocation8 + $0x78] sm:$0xff]
    %v266 = vld [vmem:[%s5] sm:$0x1]
    %v268 = vlaneseq
    %v269 = vshrl.u32 %v268, 7
    %v270 = vsub.s32 0, %v269
    %v271 = vrot.slane %v266, %v270
    %273 = vmatprep.subr.mxu0 0.0
    %274 = vmatpush1.msra.mxu0 %v265
    %275 = vmatprep.subr.mxu0 0.0
    %276 = vmatpush1.msra.mxu0 %v264
    %277 = vmatprep.subr.mxu0 0.0
    %278 = vmatpush1.msra.mxu0 %v263
    %279 = vmatprep.subr.mxu0 0.0
    %280 = vmatpush1.msra.mxu0 %v262
    %281 = vmatprep.subr.mxu0 0.0
    %282 = vmatpush1.msra.mxu0 %v261
    %283 = vmatprep.subr.mxu0 0.0
    %284 = vmatpush1.msra.mxu0 %v260
    %285 = vmatprep.subr.mxu0 0.0
    %286 = vmatpush1.msra.mxu0 %v259
    %287 = vmatprep.subr.mxu0 0.0
    %288 = vmatpush1.msra.mxu0 %v258
    %289 = vmatprep.subr.mxu0 0.0
    %290 = vmatpush1.msra.mxu0 %v257
    %291 = vmatprep.subr.mxu0 0.0
    %292 = vmatpush1.msra.mxu0 %v256
    %293 = vmatprep.subr.mxu0 0.0
    %294 = vmatpush1.msra.mxu0 %v255
    %295 = vmatprep.subr.mxu0 0.0
    %296 = vmatpush1.msra.mxu0 %v254
    %297 = vmatprep.subr.mxu0 0.0
    %298 = vmatpush1.msra.mxu0 %v253
    %299 = vmatprep.subr.mxu0 0.0
    %300 = vmatpush1.msra.mxu0 %v252
    %301 = vmatprep.subr.mxu0 0.0
    %302 = vmatpush1.msra.mxu0 %v251
    %303 = vmatprep.subr.mxu0 0.0
    %304 = vmatpush1.msra.mxu0 %v250
    %305 = vmatprep.subr.mxu0 0.0
    %306 = vmatpush2.msra.mxu0 0.0
    %307 = vmatprep.subr.mxu0 0.0
    %308 = vmatpush2.msra.mxu0 0.0
    %309 = vmatprep.subr.mxu0 0.0
    %310 = vmatpush2.msra.mxu0 0.0
    %311 = vmatprep.subr.mxu0 0.0
    %312 = vmatpush2.msra.mxu0 0.0
    %313 = vmatprep.subr.mxu0 0.0
    %314 = vmatpush2.msra.mxu0 0.0
    %315 = vmatprep.subr.mxu0 0.0
    %316 = vmatpush2.msra.mxu0 0.0
    %317 = vmatprep.subr.mxu0 0.0
    %318 = vmatpush2.msra.mxu0 0.0
    %319 = vmatprep.subr.mxu0 0.0
    %320 = vmatpush2.msra.mxu0 0.0
    %321 = vmatprep.subr.mxu0 0.0
    %322 = vmatpush2.msra.mxu0 0.0
    %323 = vmatprep.subr.mxu0 0.0
    %324 = vmatpush2.msra.mxu0 0.0
    %325 = vmatprep.subr.mxu0 0.0
    %326 = vmatpush2.msra.mxu0 0.0
    %327 = vmatprep.subr.mxu0 0.0
    %328 = vmatpush2.msra.mxu0 0.0
    %329 = vmatprep.subr.mxu0 0.0
    %330 = vmatpush2.msra.mxu0 0.0
    %331 = vmatprep.subr.mxu0 0.0
    %332 = vmatpush2.msra.mxu0 0.0
    %333 = vmatprep.subr.mxu0 0.0
    %334 = vmatpush2.msra.mxu0 0.0
    %335 = vmatprep.subr.mxu0 0.0
    %336 = vmatpush2.msra.mxu0 0.0
    %337 = vmatprep.mubr.f32.mxu0 0.0
    %338 = vmatmul.mubr.f32.gmra.mxu0 %v114
    %v339 = vpop.f32.mrf.mxu0
    %v340 = vadd.f32 %v271, %v339
    %v341 = vpop.f32.mrf.mxu0
    %342 = vmatprep.mubr.f32.mxu0 0.0
    %343 = vmatmul.mubr.f32.gmra.mxu0 %v115
    %v344 = vpop.f32.mrf.mxu0
    %v345 = vadd.f32 %v271, %v344
    %v346 = vpop.f32.mrf.mxu0
    %347 = vmatprep.mubr.f32.mxu0 0.0
    %348 = vmatmul.mubr.f32.gmra.mxu0 %v116
    %v349 = vpop.f32.mrf.mxu0
    %v350 = vadd.f32 %v271, %v349
    %v351 = vpop.f32.mrf.mxu0
    %352 = vmatprep.mubr.f32.mxu0 0.0
    %353 = vmatmul.mubr.f32.gmra.mxu0 %v117
    %v354 = vpop.f32.mrf.mxu0
    %v355 = vadd.f32 %v271, %v354
    %v356 = vpop.f32.mrf.mxu0
    %357 = vmatprep.mubr.f32.mxu0 0.0
    %358 = vmatmul.mubr.f32.gmra.mxu0 %v118
    %v359 = vpop.f32.mrf.mxu0
    %v360 = vadd.f32 %v271, %v359
    %v361 = vpop.f32.mrf.mxu0
    %362 = vmatprep.mubr.f32.mxu0 0.0
    %363 = vmatmul.mubr.f32.gmra.mxu0 %v119
    %v364 = vpop.f32.mrf.mxu0
    %v365 = vadd.f32 %v271, %v364
    %v366 = vpop.f32.mrf.mxu0
    %367 = vmatprep.mubr.f32.mxu0 0.0
    %368 = vmatmul.mubr.f32.gmra.mxu0 %v120
    %v369 = vpop.f32.mrf.mxu0
    %v370 = vadd.f32 %v271, %v369
    %v371 = vpop.f32.mrf.mxu0
    %372 = vmatprep.mubr.f32.mxu0 0.0
    %373 = vmatmul.mubr.f32.gmra.mxu0 %v121
    %v374 = vpop.f32.mrf.mxu0
    %v375 = vadd.f32 %v271, %v374
    %v376 = vpop.f32.mrf.mxu0
    %377 = vdwg.mxu0
    %v378 = vmax.f32 %v212, %v217
    %v379 = vrot.slane %v378, 4
    %v380 = vmax.f32 %v378, %v379
    %v381 = vrot.slane %v380, 2
    %v382 = vmax.f32 %v380, %v381
    %v383 = vrot.slane %v382, 1
    %v384 = vmax.f32 %v382, %v383
    %v385 = vmax.f32 %v222, %v227
    %v386 = vrot.slane %v385, 4
    %v387 = vmax.f32 %v385, %v386
    %v388 = vrot.slane %v387, 2
    %v389 = vmax.f32 %v387, %v388
    %v390 = vrot.slane %v389, 1
    %v391 = vmax.f32 %v389, %v390
    %v392 = vmax.f32 %v232, %v237
    %v393 = vrot.slane %v392, 4
    %v394 = vmax.f32 %v392, %v393
    %v395 = vrot.slane %v394, 2
    %v396 = vmax.f32 %v394, %v395
    %v397 = vrot.slane %v396, 1
    %v398 = vmax.f32 %v396, %v397
    %v399 = vmax.f32 %v242, %v247
    %v400 = vrot.slane %v399, 4
    %v401 = vmax.f32 %v399, %v400
    %v402 = vrot.slane %v401, 2
    %v403 = vmax.f32 %v401, %v402
    %v404 = vrot.slane %v403, 1
    %v405 = vmax.f32 %v403, %v404
    %v406 = vadd.f32 %v212, %v217
    %v407 = vrot.slane %v406, 4
    %v408 = vadd.f32 %v406, %v407
    %v409 = vrot.slane %v408, 2
    %v410 = vadd.f32 %v408, %v409
    %v411 = vrot.slane %v410, 1
    %v412 = vadd.f32 %v410, %v411
    %v413 = vadd.f32 %v222, %v227
    %v414 = vrot.slane %v413, 4
    %v415 = vadd.f32 %v413, %v414
    %v416 = vrot.slane %v415, 2
    %v417 = vadd.f32 %v415, %v416
    %v418 = vrot.slane %v417, 1
    %v419 = vadd.f32 %v417, %v418
    %v420 = vadd.f32 %v232, %v237
    %v421 = vrot.slane %v420, 4
    %v422 = vadd.f32 %v420, %v421
    %v423 = vrot.slane %v422, 2
    %v424 = vadd.f32 %v422, %v423
    %v425 = vrot.slane %v424, 1
    %v426 = vadd.f32 %v424, %v425
    %v427 = vadd.f32 %v242, %v247
    %v428 = vrot.slane %v427, 4
    %v429 = vadd.f32 %v427, %v428
    %v430 = vrot.slane %v429, 2
    %v431 = vadd.f32 %v429, %v430
    %v432 = vrot.slane %v431, 1
    %v433 = vadd.f32 %v431, %v432
    %v434 = vrcp.pop 16.0
    %v435 = vmul.f32 %v412, %v434
    %v436 = vmul.f32 %v419, %v434
    %v437 = vmul.f32 %v426, %v434
    %v438 = vmul.f32 %v433, %v434
    %v439 = vadd.f32 %v384, %v435
    %v440 = vadd.f32 %v391, %v436
    %v441 = vadd.f32 %v398, %v437
    %v442 = vadd.f32 %v405, %v438
    %v443 = vadd.f32 %v340, %v345
    %v444 = vrot.slane %v443, 4
    %v445 = vadd.f32 %v443, %v444
    %v446 = vrot.slane %v445, 2
    %v447 = vadd.f32 %v445, %v446
    %v448 = vrot.slane %v447, 1
    %v449 = vadd.f32 %v447, %v448
    %v450 = vadd.f32 %v350, %v355
    %v451 = vrot.slane %v450, 4
    %v452 = vadd.f32 %v450, %v451
    %v453 = vrot.slane %v452, 2
    %v454 = vadd.f32 %v452, %v453
    %v455 = vrot.slane %v454, 1
    %v456 = vadd.f32 %v454, %v455
    %v457 = vadd.f32 %v360, %v365
    %v458 = vrot.slane %v457, 4
    %v459 = vadd.f32 %v457, %v458
    %v460 = vrot.slane %v459, 2
    %v461 = vadd.f32 %v459, %v460
    %v462 = vrot.slane %v461, 1
    %v463 = vadd.f32 %v461, %v462
    %v464 = vadd.f32 %v370, %v375
    %v465 = vrot.slane %v464, 4
    %v466 = vadd.f32 %v464, %v465
    %v467 = vrot.slane %v466, 2
    %v468 = vadd.f32 %v466, %v467
    %v469 = vrot.slane %v468, 1
    %v470 = vadd.f32 %v468, %v469
    %v471 = vmul.f32 %v449, %v434
    %v472 = vmul.f32 %v456, %v434
    %v473 = vmul.f32 %v463, %v434
    %v474 = vmul.f32 %v470, %v434
    %vm479 = vcmask 1041409
    %v480 = vsel %vm479, %v440, %v439
    %vm481 = vcmask 1042434
    %v482 = vsel %vm481, %v441, %v480
    %vm483 = vcmask 1043459
    %v484 = vsel %vm483, %v442, %v482
    %vm490 = vcmask 1045509
    %v491 = vsel %vm490, %v472, %v471
    %vm492 = vcmask 1046534
    %v493 = vsel %vm492, %v473, %v491
    %vm494 = vcmask 1047559
    %v495 = vsel %vm494, %v474, %v493
    %vm497 = vcmask 1043456
    %v498 = vsel %vm497, %v484, %v495
    %v499 = vld [vmem:[#allocation10] sm:$0xff]
    %v500 = vld [vmem:[#allocation10 + $0x8] sm:$0xff]
    %v501 = vld [vmem:[#allocation10 + $0x10] sm:$0xff]
    %v502 = vld [vmem:[#allocation10 + $0x18] sm:$0xff]
    %v503 = vld [vmem:[#allocation10 + $0x20] sm:$0xff]
    %v504 = vld [vmem:[#allocation10 + $0x28] sm:$0xff]
    %v505 = vld [vmem:[#allocation10 + $0x30] sm:$0xff]
    %v506 = vld [vmem:[#allocation10 + $0x38] sm:$0xff]
    %v507 = vld [vmem:[#allocation10 + $0x40] sm:$0xff]
    %v508 = vld [vmem:[#allocation10 + $0x48] sm:$0xff]
    %v509 = vld [vmem:[#allocation10 + $0x50] sm:$0xff]
    %v510 = vld [vmem:[#allocation10 + $0x58] sm:$0xff]
    %v511 = vld [vmem:[#allocation10 + $0x60] sm:$0xff]
    %v512 = vld [vmem:[#allocation10 + $0x68] sm:$0xff]
    %v513 = vld [vmem:[#allocation10 + $0x70] sm:$0xff]
    %v514 = vld [vmem:[#allocation10 + $0x78] sm:$0xff]
    %v515 = vld [vmem:[%s7] sm:$0x1]
    %v517 = vlaneseq
    %v518 = vshrl.u32 %v517, 7
    %v519 = vsub.s32 0, %v518
    %v520 = vrot.slane %v515, %v519
    %522 = vmatprep.subr.mxu0 0.0
    %523 = vmatpush1.msra.mxu0 %v514
    %524 = vmatprep.subr.mxu0 0.0
    %525 = vmatpush1.msra.mxu0 %v513
    %526 = vmatprep.subr.mxu0 0.0
    %527 = vmatpush1.msra.mxu0 %v512
    %528 = vmatprep.subr.mxu0 0.0
    %529 = vmatpush1.msra.mxu0 %v511
    %530 = vmatprep.subr.mxu0 0.0
    %531 = vmatpush1.msra.mxu0 %v510
    %532 = vmatprep.subr.mxu0 0.0
    %533 = vmatpush1.msra.mxu0 %v509
    %534 = vmatprep.subr.mxu0 0.0
    %535 = vmatpush1.msra.mxu0 %v508
    %536 = vmatprep.subr.mxu0 0.0
    %537 = vmatpush1.msra.mxu0 %v507
    %538 = vmatprep.subr.mxu0 0.0
    %539 = vmatpush1.msra.mxu0 %v506
    %540 = vmatprep.subr.mxu0 0.0
    %541 = vmatpush1.msra.mxu0 %v505
    %542 = vmatprep.subr.mxu0 0.0
    %543 = vmatpush1.msra.mxu0 %v504
    %544 = vmatprep.subr.mxu0 0.0
    %545 = vmatpush1.msra.mxu0 %v503
    %546 = vmatprep.subr.mxu0 0.0
    %547 = vmatpush1.msra.mxu0 %v502
    %548 = vmatprep.subr.mxu0 0.0
    %549 = vmatpush1.msra.mxu0 %v501
    %550 = vmatprep.subr.mxu0 0.0
    %551 = vmatpush1.msra.mxu0 %v500
    %552 = vmatprep.subr.mxu0 0.0
    %553 = vmatpush1.msra.mxu0 %v499
    %554 = vmatprep.subr.mxu0 0.0
    %555 = vmatpush2.msra.mxu0 0.0
    %556 = vmatprep.subr.mxu0 0.0
    %557 = vmatpush2.msra.mxu0 0.0
    %558 = vmatprep.subr.mxu0 0.0
    %559 = vmatpush2.msra.mxu0 0.0
    %560 = vmatprep.subr.mxu0 0.0
    %561 = vmatpush2.msra.mxu0 0.0
    %562 = vmatprep.subr.mxu0 0.0
    %563 = vmatpush2.msra.mxu0 0.0
    %564 = vmatprep.subr.mxu0 0.0
    %565 = vmatpush2.msra.mxu0 0.0
    %566 = vmatprep.subr.mxu0 0.0
    %567 = vmatpush2.msra.mxu0 0.0
    %568 = vmatprep.subr.mxu0 0.0
    %569 = vmatpush2.msra.mxu0 0.0
    %570 = vmatprep.subr.mxu0 0.0
    %571 = vmatpush2.msra.mxu0 0.0
    %572 = vmatprep.subr.mxu0 0.0
    %573 = vmatpush2.msra.mxu0 0.0
    %574 = vmatprep.subr.mxu0 0.0
    %575 = vmatpush2.msra.mxu0 0.0
    %576 = vmatprep.subr.mxu0 0.0
    %577 = vmatpush2.msra.mxu0 0.0
    %578 = vmatprep.subr.mxu0 0.0
    %579 = vmatpush2.msra.mxu0 0.0
    %580 = vmatprep.subr.mxu0 0.0
    %581 = vmatpush2.msra.mxu0 0.0
    %582 = vmatprep.subr.mxu0 0.0
    %583 = vmatpush2.msra.mxu0 0.0
    %584 = vmatprep.subr.mxu0 0.0
    %585 = vmatpush2.msra.mxu0 0.0
    %586 = vmatprep.mubr.f32.mxu0 0.0
    %587 = vmatmul.mubr.f32.gmra.mxu0 %v498
    %v588 = vpop.f32.mrf.mxu0
    %v589 = vadd.f32 %v520, %v588
    %v590 = vpop.f32.mrf.mxu0
    %591 = vdwg.mxu0
    %v592 = vxor.u32 %v589, 2147483648
    %v593 = vmul.f32 %v592, 1.442695
    %v594 = vpow.pop %v593
    %v595 = vadd.f32 %v594, 1.0
    %v596 = vrcp.pop %v595
    %v597 = vmul.f32 1.0, %v596
    %v599 = vrot.slane %v597, 4
    %v601 = vmax.f32 %v597, %v599
    %v602 = vsub.f32 %v597, %v601
    %v603 = vmul.f32 %v602, 1.442695
    %v604 = vpow.pop %v603
    %v606 = vrot.slane %v601, 4
    %v608 = vsub.f32 %v597, %v606
    %v609 = vmul.f32 %v608, 1.442695
    %v610 = vpow.pop %v609
    %v612 = vrot.slane %v610, 4
    %v614 = vadd.f32 %v604, %v612
    %v615 = vrcp.pop %v614
    %v616 = vmul.f32 1.0, %v615
    %v617 = vmul.f32 %v604, %v616
    %v619 = vrot.slane %v616, 4
    %v621 = vmul.f32 %v610, %v619
    %v623 = vunpack.c.l.s4 1966171168
    %v624 = vunpack.c.0.s8 %v623
    %v625 = vlaneseq
    %v626 = vshrl.u32 %v625, 7
    %v627 = vsub.s32 %v624, %v626
    %v628 = vrot.slane %v597, %v627
    %v629 = vcombine.high %v628, %v628
    %v631 = vunpack.c.l.s4 1966171168
    %v632 = vunpack.c.0.s8 %v631
    %v633 = vlaneseq
    %v634 = vshrl.u32 %v633, 7
    %v635 = vsub.s32 %v632, %v634
    %v636 = vrot.slane %v628, %v635
    %v638 = vunpack.c.l.s4 1966171168
    %v639 = vunpack.c.0.s8 %v638
    %v640 = vlaneseq
    %v641 = vshrl.u32 %v640, 7
    %v642 = vsub.s32 %v639, %v641
    %v643 = vrot.slane %v629, %v642
    %v644 = vcombine.high %v636, %v636
    %v645 = vcombine.high %v643, %v643
    %v646 = vlaneseq
    %v647 = vshrl.u32 %v646, 7
    %v648 = vsub.s32 0, %v647
    %v649 = vrot.slane %v636, %v648
    %v650 = vlaneseq
    %v651 = vshrl.u32 %v650, 7
    %v652 = vsub.s32 0, %v651
    %v653 = vrot.slane %v643, %v652
    %v654 = vlaneseq
    %v655 = vshrl.u32 %v654, 7
    %v656 = vsub.s32 0, %v655
    %v657 = vrot.slane %v644, %v656
    %v658 = vlaneseq
    %v659 = vshrl.u32 %v658, 7
    %v660 = vsub.s32 0, %v659
    %v661 = vrot.slane %v645, %v660
    %v666 = vmul.f32 %v106, %v649
    %v667 = vmul.f32 %v107, %v649
    %v668 = vmul.f32 %v108, %v653
    %v669 = vmul.f32 %v109, %v653
    %v670 = vmul.f32 %v110, %v657
    %v671 = vmul.f32 %v111, %v657
    %v672 = vmul.f32 %v112, %v661
    %v673 = vmul.f32 %v113, %v661
    %v674 = vcombine.high %v597, %v597
    %v676 = vunpack.c.l.s4 1966171168
    %v677 = vunpack.c.0.s8 %v676
    %v678 = vlaneseq
    %v679 = vshrl.u32 %v678, 7
    %v680 = vsub.s32 %v677, %v679
    %v681 = vrot.slane %v674, %v680
    %v682 = vcombine.high %v681, %v681
    %v684 = vunpack.c.l.s4 1966171168
    %v685 = vunpack.c.0.s8 %v684
    %v686 = vlaneseq
    %v687 = vshrl.u32 %v686, 7
    %v688 = vsub.s32 %v685, %v687
    %v689 = vrot.slane %v681, %v688
    %v691 = vunpack.c.l.s4 1966171168
    %v692 = vunpack.c.0.s8 %v691
    %v693 = vlaneseq
    %v694 = vshrl.u32 %v693, 7
    %v695 = vsub.s32 %v692, %v694
    %v696 = vrot.slane %v682, %v695
    %v697 = vcombine.high %v689, %v689
    %v698 = vcombine.high %v696, %v696
    %v703 = vlaneseq
    %v704 = vshrl.u32 %v703, 7
    %v705 = vsub.s32 0, %v704
    %v706 = vrot.slane %v689, %v705
    %v707 = vlaneseq
    %v708 = vshrl.u32 %v707, 7
    %v709 = vsub.s32 0, %v708
    %v710 = vrot.slane %v696, %v709
    %v711 = vlaneseq
    %v712 = vshrl.u32 %v711, 7
    %v713 = vsub.s32 0, %v712
    %v714 = vrot.slane %v697, %v713
    %v715 = vlaneseq
    %v716 = vshrl.u32 %v715, 7
    %v717 = vsub.s32 0, %v716
    %v718 = vrot.slane %v698, %v717
    %v723 = vmul.f32 %v114, %v706
    %v724 = vmul.f32 %v115, %v706
    %v725 = vmul.f32 %v116, %v710
    %v726 = vmul.f32 %v117, %v710
    %v727 = vmul.f32 %v118, %v714
    %v728 = vmul.f32 %v119, %v714
    %v729 = vmul.f32 %v120, %v718
    %v730 = vmul.f32 %v121, %v718
    %v733 = vunpack.c.l.s4 1966171168
    %v734 = vunpack.c.0.s8 %v733
    %v735 = vlaneseq
    %v736 = vshrl.u32 %v735, 7
    %v737 = vsub.s32 %v734, %v736
    %v738 = vrot.slane %v617, %v737
    %v739 = vcombine.high %v738, %v738
    %v741 = vunpack.c.l.s4 1966171168
    %v742 = vunpack.c.0.s8 %v741
    %v743 = vlaneseq
    %v744 = vshrl.u32 %v743, 7
    %v745 = vsub.s32 %v742, %v744
    %v746 = vrot.slane %v738, %v745
    %v748 = vunpack.c.l.s4 1966171168
    %v749 = vunpack.c.0.s8 %v748
    %v750 = vlaneseq
    %v751 = vshrl.u32 %v750, 7
    %v752 = vsub.s32 %v749, %v751
    %v753 = vrot.slane %v739, %v752
    %v754 = vcombine.high %v746, %v746
    %v755 = vcombine.high %v753, %v753
    %v756 = vlaneseq
    %v757 = vshrl.u32 %v756, 7
    %v758 = vsub.s32 0, %v757
    %v759 = vrot.slane %v746, %v758
    %v760 = vlaneseq
    %v761 = vshrl.u32 %v760, 7
    %v762 = vsub.s32 0, %v761
    %v763 = vrot.slane %v753, %v762
    %v764 = vlaneseq
    %v765 = vshrl.u32 %v764, 7
    %v766 = vsub.s32 0, %v765
    %v767 = vrot.slane %v754, %v766
    %v768 = vlaneseq
    %v769 = vshrl.u32 %v768, 7
    %v770 = vsub.s32 0, %v769
    %v771 = vrot.slane %v755, %v770
    %v776 = vmul.f32 %v666, %v759
    %v777 = vmul.f32 %v667, %v759
    %v778 = vmul.f32 %v668, %v763
    %v779 = vmul.f32 %v669, %v763
    %v780 = vmul.f32 %v670, %v767
    %v781 = vmul.f32 %v671, %v767
    %v782 = vmul.f32 %v672, %v771
    %v783 = vmul.f32 %v673, %v771
    %v785 = vcombine.high %v621, %v621
    %v787 = vunpack.c.l.s4 1966171168
    %v788 = vunpack.c.0.s8 %v787
    %v789 = vlaneseq
    %v790 = vshrl.u32 %v789, 7
    %v791 = vsub.s32 %v788, %v790
    %v792 = vrot.slane %v785, %v791
    %v793 = vcombine.high %v792, %v792
    %v795 = vunpack.c.l.s4 1966171168
    %v796 = vunpack.c.0.s8 %v795
    %v797 = vlaneseq
    %v798 = vshrl.u32 %v797, 7
    %v799 = vsub.s32 %v796, %v798
    %v800 = vrot.slane %v792, %v799
    %v802 = vunpack.c.l.s4 1966171168
    %v803 = vunpack.c.0.s8 %v802
    %v804 = vlaneseq
    %v805 = vshrl.u32 %v804, 7
    %v806 = vsub.s32 %v803, %v805
    %v807 = vrot.slane %v793, %v806
    %v808 = vcombine.high %v800, %v800
    %v809 = vcombine.high %v807, %v807
    %v810 = vlaneseq
    %v811 = vshrl.u32 %v810, 7
    %v812 = vsub.s32 0, %v811
    %v813 = vrot.slane %v800, %v812
    %v814 = vlaneseq
    %v815 = vshrl.u32 %v814, 7
    %v816 = vsub.s32 0, %v815
    %v817 = vrot.slane %v807, %v816
    %v818 = vlaneseq
    %v819 = vshrl.u32 %v818, 7
    %v820 = vsub.s32 0, %v819
    %v821 = vrot.slane %v808, %v820
    %v822 = vlaneseq
    %v823 = vshrl.u32 %v822, 7
    %v824 = vsub.s32 0, %v823
    %v825 = vrot.slane %v809, %v824
    %v830 = vmul.f32 %v723, %v813
    %v831 = vmul.f32 %v724, %v813
    %v832 = vmul.f32 %v725, %v817
    %v833 = vmul.f32 %v726, %v817
    %v834 = vmul.f32 %v727, %v821
    %v835 = vmul.f32 %v728, %v821
    %v836 = vmul.f32 %v729, %v825
    %v837 = vmul.f32 %v730, %v825
    %v838 = vadd.f32 %v776, %v830
    %v839 = vadd.f32 %v777, %v831
    %v840 = vadd.f32 %v778, %v832
    %v841 = vadd.f32 %v779, %v833
    %v842 = vadd.f32 %v780, %v834
    %v843 = vadd.f32 %v781, %v835
    %v844 = vadd.f32 %v782, %v836
    %v845 = vadd.f32 %v783, %v837
    %846 = vst [vmem:[#allocation11] sm:$0xff] %v838
    %847 = vst [vmem:[#allocation11 + $0x8] sm:$0xff] %v839
    %848 = vst [vmem:[#allocation11 + $0x10] sm:$0xff] %v840
    %849 = vst [vmem:[#allocation11 + $0x18] sm:$0xff] %v841
    %850 = vst [vmem:[#allocation11 + $0x20] sm:$0xff] %v842
    %851 = vst [vmem:[#allocation11 + $0x28] sm:$0xff] %v843
    %852 = vst [vmem:[#allocation11 + $0x30] sm:$0xff] %v844
    %853 = vst [vmem:[#allocation11 + $0x38] sm:$0xff] %v845
    %854 = vst [vmem:[#allocation12] sm:$0xff] %v723
    %855 = vst [vmem:[#allocation12 + $0x8] sm:$0xff] %v724
    %856 = vst [vmem:[#allocation12 + $0x10] sm:$0xff] %v725
    %857 = vst [vmem:[#allocation12 + $0x18] sm:$0xff] %v726
    %858 = vst [vmem:[#allocation12 + $0x20] sm:$0xff] %v727
    %859 = vst [vmem:[#allocation12 + $0x28] sm:$0xff] %v728
    %860 = vst [vmem:[#allocation12 + $0x30] sm:$0xff] %v729
    %861 = vst [vmem:[#allocation12 + $0x38] sm:$0xff] %v730
    %862 = vst [vmem:[#allocation14] sm:$0xff] %v830
    %863 = vst [vmem:[#allocation14 + $0x8] sm:$0xff] %v831
    %864 = vst [vmem:[#allocation14 + $0x10] sm:$0xff] %v832
    %865 = vst [vmem:[#allocation14 + $0x18] sm:$0xff] %v833
    %866 = vst [vmem:[#allocation14 + $0x20] sm:$0xff] %v834
    %867 = vst [vmem:[#allocation14 + $0x28] sm:$0xff] %v835
    %868 = vst [vmem:[#allocation14 + $0x30] sm:$0xff] %v836
    %869 = vst [vmem:[#allocation14 + $0x38] sm:$0xff] %v837
    %870 = vst [vmem:[#allocation15] sm:$0xff] %v666
    %871 = vst [vmem:[#allocation15 + $0x8] sm:$0xff] %v667
    %872 = vst [vmem:[#allocation15 + $0x10] sm:$0xff] %v668
    %873 = vst [vmem:[#allocation15 + $0x18] sm:$0xff] %v669
    %874 = vst [vmem:[#allocation15 + $0x20] sm:$0xff] %v670
    %875 = vst [vmem:[#allocation15 + $0x28] sm:$0xff] %v671
    %876 = vst [vmem:[#allocation15 + $0x30] sm:$0xff] %v672
    %877 = vst [vmem:[#allocation15 + $0x38] sm:$0xff] %v673
    %878 = vst [vmem:[#allocation17] sm:$0xff] %v776
    %879 = vst [vmem:[#allocation17 + $0x8] sm:$0xff] %v777
    %880 = vst [vmem:[#allocation17 + $0x10] sm:$0xff] %v778
    %881 = vst [vmem:[#allocation17 + $0x18] sm:$0xff] %v779
    %882 = vst [vmem:[#allocation17 + $0x20] sm:$0xff] %v780
    %883 = vst [vmem:[#allocation17 + $0x28] sm:$0xff] %v781
    %884 = vst [vmem:[#allocation17 + $0x30] sm:$0xff] %v782
    %885 = vst [vmem:[#allocation17 + $0x38] sm:$0xff] %v783
    %vm886 = vcmask 1040384
    %v887 = vsel %vm886, %v689, %v813
    %v888 = vsel %vm886, %v696, %v817
    %v889 = vsel %vm886, %v697, %v821
    %v890 = vsel %vm886, %v698, %v825
    %vm891 = vcmask 1041408
    %v892 = vsel %vm891, %v887, %v649
    %v893 = vsel %vm891, %v888, %v653
    %v894 = vsel %vm891, %v889, %v657
    %v895 = vsel %vm891, %v890, %v661
    %vm896 = vcmask 1042432
    %v897 = vsel %vm896, %v892, %v759
    %v898 = vsel %vm896, %v893, %v763
    %v899 = vsel %vm896, %v894, %v767
    %v900 = vsel %vm896, %v895, %v771
    %v901 = vsel %vm497, %v897, %v439
    %v902 = vsel %vm497, %v898, %v440
    %v903 = vsel %vm497, %v899, %v441
    %v904 = vsel %vm497, %v900, %v442
    %905 = vst [vmem:[%s13] sm:$0x1f] %v901
    %906 = vst [vmem:[%s13 + $0x8] sm:$0x1f] %v902
    %907 = vst [vmem:[%s13 + $0x10] sm:$0x1f] %v903
    %908 = vst [vmem:[%s13 + $0x18] sm:$0x1f] %v904
    // Predicated region
    $region54: #{tpu_custom_call.1} parent=1 // pred_check
      _
    $region55: #{tpu_custom_call.1} parent=1 // pred_check_branch
      %910 = sbr.rel (0) target = $region57
    $region56: #{tpu_custom_call.1} parent=1 // pred_region
      %s912 = ssub.s32 1024, 1024
      %913 = vsyncadd [#allocation4], %s912
      %s914 = sshll.u32 [#allocation11], 4
      %s915 = int_to_ptr.vmem [resolvable:$true] %s914
      %920 = dma.vmem_to_hbm [thread:$0]  %s915, 1024, %s8, [#allocation4], 128, 128, 8
    $region57: #{tpu_custom_call.1} parent=1 // pred_fallthru
      _
    // Predicated region
    $region58: #{tpu_custom_call.1} parent=1 // pred_check
      _
    $region59: #{tpu_custom_call.1} parent=1 // pred_check_branch
      %922 = sbr.rel (0) target = $region61
    $region60: #{tpu_custom_call.1} parent=1 // pred_region
      %s924 = ssub.s32 1024, 1024
      %925 = vsyncadd [#allocation13], %s924
      %s926 = sshll.u32 [#allocation12], 4
      %s927 = int_to_ptr.vmem [resolvable:$true] %s926
      %932 = dma.vmem_to_hbm [thread:$0]  %s927, 1024, %s9, [#allocation13], 128, 128, 8
    $region61: #{tpu_custom_call.1} parent=1 // pred_fallthru
      _
    // Predicated region
    $region62: #{tpu_custom_call.1} parent=1 // pred_check
      _
    $region63: #{tpu_custom_call.1} parent=1 // pred_check_branch
      %934 = sbr.rel (0) target = $region65
    $region64: #{tpu_custom_call.1} parent=1 // pred_region
      %s936 = ssub.s32 1024, 1024
      %937 = vsyncadd [#allocation13], %s936
      %s938 = sshll.u32 [#allocation14], 4
      %s939 = int_to_ptr.vmem [resolvable:$true] %s938
      %944 = dma.vmem_to_hbm [thread:$0]  %s939, 1024, %s10, [#allocation13], 128, 128, 8
    $region65: #{tpu_custom_call.1} parent=1 // pred_fallthru
      _
    // Predicated region
    $region66: #{tpu_custom_call.1} parent=1 // pred_check
      _
    $region67: #{tpu_custom_call.1} parent=1 // pred_check_branch
      %946 = sbr.rel (0) target = $region69
    $region68: #{tpu_custom_call.1} parent=1 // pred_region
      %s948 = ssub.s32 1024, 1024
      %949 = vsyncadd [#allocation16], %s948
      %s950 = sshll.u32 [#allocation15], 4
      %s951 = int_to_ptr.vmem [resolvable:$true] %s950
      %956 = dma.vmem_to_hbm [thread:$0]  %s951, 1024, %s11, [#allocation16], 128, 128, 8
    $region69: #{tpu_custom_call.1} parent=1 // pred_fallthru
      _
    // Predicated region
    $region70: #{tpu_custom_call.1} parent=1 // pred_check
      _
    $region71: #{tpu_custom_call.1} parent=1 // pred_check_branch
      %958 = sbr.rel (0) target = $region73
    $region72: #{tpu_custom_call.1} parent=1 // pred_region
      %s960 = ssub.s32 1024, 1024
      %961 = vsyncadd [#allocation16], %s960
      %s962 = sshll.u32 [#allocation17], 4
      %s963 = int_to_ptr.vmem [resolvable:$true] %s962
      %968 = dma.vmem_to_hbm [thread:$0]  %s963, 1024, %s12, [#allocation16], 128, 128, 8
    $region73: #{tpu_custom_call.1} parent=1 // pred_fallthru
      _
    // Predicated region
    $region74: #{tpu_custom_call.1} parent=1 // pred_check
      _
    $region75: #{tpu_custom_call.1} parent=1 // pred_check_branch
      %970 = sbr.rel (0) target = $region77
    $region76: #{tpu_custom_call.1} parent=1 // pred_region
      _
    $region77: #{tpu_custom_call.1} parent=1 // pred_fallthru
      _
    // Predicated region
    $region78: #{tpu_custom_call.1} parent=1 // pred_check
      _
    $region79: #{tpu_custom_call.1} parent=1 // pred_check_branch
      %972 = sbr.rel (0) target = $region81
    $region80: #{tpu_custom_call.1} parent=1 // pred_region
      %973 = dma.done [#allocation4], 1024
    $region81: #{tpu_custom_call.1} parent=1 // pred_fallthru
      _
    // Predicated region
    $region82: #{tpu_custom_call.1} parent=1 // pred_check
      _
    $region83: #{tpu_custom_call.1} parent=1 // pred_check_branch
      %975 = sbr.rel (0) target = $region85
    $region84: #{tpu_custom_call.1} parent=1 // pred_region
      %976 = dma.done [#allocation13], 1024
    $region85: #{tpu_custom_call.1} parent=1 // pred_fallthru
      _
    // Predicated region
    $region86: #{tpu_custom_call.1} parent=1 // pred_check
      _
    $region87: #{tpu_custom_call.1} parent=1 // pred_check_branch
      %978 = sbr.rel (0) target = $region89
    $region88: #{tpu_custom_call.1} parent=1 // pred_region
      %979 = dma.done [#allocation13], 1024
    $region89: #{tpu_custom_call.1} parent=1 // pred_fallthru
      _
    // Predicated region
    $region90: #{tpu_custom_call.1} parent=1 // pred_check
      _
    $region91: #{tpu_custom_call.1} parent=1 // pred_check_branch
      %981 = sbr.rel (0) target = $region93
    $region92: #{tpu_custom_call.1} parent=1 // pred_region
      %982 = dma.done [#allocation16], 1024
    $region93: #{tpu_custom_call.1} parent=1 // pred_fallthru
      _
    // Predicated region
    $region94: #{tpu_custom_call.1} parent=1 // pred_check
      _
    $region95: #{tpu_custom_call.1} parent=1 // pred_check_branch
      %984 = sbr.rel (0) target = $region97
    $region96: #{tpu_custom_call.1} parent=1 // pred_region
      %985 = dma.done [#allocation16], 1024
    $region97: #{tpu_custom_call.1} parent=1 // pred_fallthru
      _
    // Predicated region
    $region98: #{tpu_custom_call.1} parent=1 // pred_check
      _
    $region99: #{tpu_custom_call.1} parent=1 // pred_check_branch
      %987 = sbr.rel (0) target = $region101
    $region100: #{tpu_custom_call.1} parent=1 // pred_region
      _
    $region101: #{tpu_custom_call.1} parent=1 // pred_fallthru
      _
    %988 = vsyncpa [#allocation3], 1
    %989 = vsyncpa [#allocation6], 1
    %990 = vsyncpa [#allocation9], 1
    %991 = vsyncpa [#allocation4], 1
    %992 = vsyncpa [#allocation13], 1
    %993 = vsyncpa [#allocation16], 1

// kernel: tpu_custom_call.1
$region0: #{tpu_custom_call.1}
  #allocation0 [shape = 'u32[]', space=smem, size = 0x4, offset = 0x4, fixed_abs, tag = 'smem constant byte address 0x4 - core index']
  #allocation1 [shape = 'u32[144,128]{1,0:T(1,128)}', space=vmem, size = 0x12000, scoped, tag = 'internal scratch']
  %s0 = inlined_call_operand.hbm [shape: f32[4,16,128], index: 0, kind: input, shape index: {}]
  %s1 = inlined_call_operand.hbm [shape: f32[4,16,128], index: 1, kind: input, shape index: {}]
  %s2 = inlined_call_operand.hbm [shape: f32[128,128], index: 2, kind: input, shape index: {}]
  %s3 = inlined_call_operand.vmem [shape: f32[1,128], index: 3, kind: input, shape index: {}]
  %s4 = inlined_call_operand.hbm [shape: f32[128,128], index: 4, kind: input, shape index: {}]
  %s5 = inlined_call_operand.vmem [shape: f32[1,128], index: 5, kind: input, shape index: {}]
  %s6 = inlined_call_operand.hbm [shape: f32[128,128], index: 6, kind: input, shape index: {}]
  %s7 = inlined_call_operand.vmem [shape: f32[1,128], index: 7, kind: input, shape index: {}]
  %s8 = inlined_call_operand.hbm [shape: f32[4,16,128], index: 8, kind: output, shape index: {0}]
  %s9 = inlined_call_operand.hbm [shape: f32[4,16,128], index: 9, kind: output, shape index: {1}]
  %s10 = inlined_call_operand.hbm [shape: f32[4,16,128], index: 10, kind: output, shape index: {2}]
  %s11 = inlined_call_operand.hbm [shape: f32[4,16,128], index: 11, kind: output, shape index: {3}]
  %s12 = inlined_call_operand.hbm [shape: f32[4,16,128], index: 12, kind: output, shape index: {4}]
  %s13 = inlined_call_operand.vmem [shape: f32[4,5,128], index: 13, kind: output, shape index: {5}]
  %14 = xla_tuple %s8, %s9, %s10, %s11, %s12, %s13
  %s15 = sld [smem:[#allocation0]]
  $region102: #{tpu_custom_call.1} parent=0
    _
  %s17 = ssub.s32 1, %s15
  %s18 = scalar_select 0, %s17, %s15
  $region1: #{tpu_custom_call.1} parent=0
    #allocation2 [shape = 'u8[32768]{0}', space=vmem, size = 0x8000, scoped, tag = 'input window, operand 0, single buffered']
    #allocation3 [shape = 's32[1]{0}', space=sflag, size = 0x4, scoped, tag = 'scoped memory for tpu_custom_call.1']
    #allocation4 [shape = 's32[1]{0}', space=sflag, size = 0x4, scoped, tag = 'scoped memory for tpu_custom_call.1']
    #allocation5 [shape = 'u8[32768]{0}', space=vmem, size = 0x8000, scoped, tag = 'input window, operand 1, single buffered']
    #allocation6 [shape = 's32[1]{0}', space=sflag, size = 0x4, scoped, tag = 'scoped memory for tpu_custom_call.1']
    #allocation7 [shape = 'u8[65536]{0}', space=vmem, size = 0x10000, scoped, tag = 'input window, operand 2, single buffered']
    #allocation8 [shape = 'u8[65536]{0}', space=vmem, size = 0x10000, scoped, tag = 'input window, operand 4, single buffered']
    #allocation9 [shape = 's32[1]{0}', space=sflag, size = 0x4, scoped, tag = 'scoped memory for tpu_custom_call.1']
    #allocation10 [shape = 'u8[65536]{0}', space=vmem, size = 0x10000, scoped, tag = 'input window, operand 6, single buffered']
    #allocation11 [shape = 'u8[32768]{0}', space=vmem, size = 0x8000, scoped, tag = 'output window, operand 0, single buffered']
    #allocation12 [shape = 'u8[32768]{0}', space=vmem, size = 0x8000, scoped, tag = 'output window, operand 1, single buffered']
    #allocation13 [shape = 's32[1]{0}', space=sflag, size = 0x4, scoped, tag = 'scoped memory for tpu_custom_call.1']
    #allocation14 [shape = 'u8[32768]{0}', space=vmem, size = 0x8000, scoped, tag = 'output window, operand 2, single buffered']
    #allocation15 [shape = 'u8[32768]{0}', space=vmem, size = 0x8000, scoped, tag = 'output window, operand 3, single buffered']
    #allocation16 [shape = 's32[1]{0}', space=sflag, size = 0x4, scoped, tag = 'scoped memory for tpu_custom_call.1']
    #allocation17 [shape = 'u8[32768]{0}', space=vmem, size = 0x8000, scoped, tag = 'output window, operand 4, single buffered']
    %19 = vsyncpa [#allocation3], 0
    %20 = vsyncpa [#allocation6], 0
    %21 = vsyncpa [#allocation9], 0
    %22 = vsyncpa [#allocation4], 0
    %23 = vsyncpa [#allocation13], 0
    %24 = vsyncpa [#allocation16], 0
    // Predicated region
    $region2: #{tpu_custom_call.1} parent=1 // pred_check
      _
    $region3: #{tpu_custom_call.1} parent=1 // pred_check_branch
      %26 = sbr.rel (0) target = $region5
    $region4: #{tpu_custom_call.1} parent=1 // pred_region
      %s28 = ssub.s32 1024, 1024
      %29 = vsyncadd [#allocation3], %s28
      %s30 = sshll.u32 [#allocation2], 4
      %s31 = int_to_ptr.vmem [resolvable:$true] %s30
      %36 = dma.hbm_to_vmem [thread:$0]  %s0, 1024, %s31, [#allocation3], 128, 128, 8
    $region5: #{tpu_custom_call.1} parent=1 // pred_fallthru
      _
    // Predicated region
    $region6: #{tpu_custom_call.1} parent=1 // pred_check
      _
    $region7: #{tpu_custom_call.1} parent=1 // pred_check_branch
      %38 = sbr.rel (0) target = $region9
    $region8: #{tpu_custom_call.1} parent=1 // pred_region
      %s40 = ssub.s32 1024, 1024
      %41 = vsyncadd [#allocation6], %s40
      %s42 = sshll.u32 [#allocation5], 4
      %s43 = int_to_ptr.vmem [resolvable:$true] %s42
      %48 = dma.hbm_to_vmem [thread:$0]  %s1, 1024, %s43, [#allocation6], 128, 128, 8
    $region9: #{tpu_custom_call.1} parent=1 // pred_fallthru
      _
    // Predicated region
    $region10: #{tpu_custom_call.1} parent=1 // pred_check
      _
    $region11: #{tpu_custom_call.1} parent=1 // pred_check_branch
      %50 = sbr.rel (0) target = $region13
    $region12: #{tpu_custom_call.1} parent=1 // pred_region
      %s52 = ssub.s32 2048, 2048
      %53 = vsyncadd [#allocation6], %s52
      %s54 = sshll.u32 [#allocation7], 4
      %s55 = int_to_ptr.vmem [resolvable:$true] %s54
      %60 = dma.hbm_to_vmem [thread:$0]  %s2, 2048, %s55, [#allocation6], 128, 128, 8
    $region13: #{tpu_custom_call.1} parent=1 // pred_fallthru
      _
    // Predicated region
    $region14: #{tpu_custom_call.1} parent=1 // pred_check
      _
    $region15: #{tpu_custom_call.1} parent=1 // pred_check_branch
      %62 = sbr.rel (0) target = $region17
    $region16: #{tpu_custom_call.1} parent=1 // pred_region
      _
    $region17: #{tpu_custom_call.1} parent=1 // pred_fallthru
      _
    // Predicated region
    $region18: #{tpu_custom_call.1} parent=1 // pred_check
      _
    $region19: #{tpu_custom_call.1} parent=1 // pred_check_branch
      %64 = sbr.rel (0) target = $region21
    $region20: #{tpu_custom_call.1} parent=1 // pred_region
      %s66 = ssub.s32 2048, 2048
      %67 = vsyncadd [#allocation9], %s66
      %s68 = sshll.u32 [#allocation8], 4
      %s69 = int_to_ptr.vmem [resolvable:$true] %s68
      %74 = dma.hbm_to_vmem [thread:$0]  %s4, 2048, %s69, [#allocation9], 128, 128, 8
    $region21: #{tpu_custom_call.1} parent=1 // pred_fallthru
      _
    // Predicated region
    $region22: #{tpu_custom_call.1} parent=1 // pred_check
      _
    $region23: #{tpu_custom_call.1} parent=1 // pred_check_branch
      %76 = sbr.rel (0) target = $region25
    $region24: #{tpu_custom_call.1} parent=1 // pred_region
      _
    $region25: #{tpu_custom_call.1} parent=1 // pred_fallthru
      _
    // Predicated region
    $region26: #{tpu_custom_call.1} parent=1 // pred_check
      _
    $region27: #{tpu_custom_call.1} parent=1 // pred_check_branch
      %78 = sbr.rel (0) target = $region29
    $region28: #{tpu_custom_call.1} parent=1 // pred_region
      %s80 = ssub.s32 2048, 2048
      %81 = vsyncadd [#allocation9], %s80
      %s82 = sshll.u32 [#allocation10], 4
      %s83 = int_to_ptr.vmem [resolvable:$true] %s82
      %88 = dma.hbm_to_vmem [thread:$0]  %s6, 2048, %s83, [#allocation9], 128, 128, 8
    $region29: #{tpu_custom_call.1} parent=1 // pred_fallthru
      _
    // Predicated region
    $region30: #{tpu_custom_call.1} parent=1 // pred_check
      _
    $region31: #{tpu_custom_call.1} parent=1 // pred_check_branch
      %90 = sbr.rel (0) target = $region33
    $region32: #{tpu_custom_call.1} parent=1 // pred_region
      _
    $region33: #{tpu_custom_call.1} parent=1 // pred_fallthru
      _
    // Predicated region
    $region34: #{tpu_custom_call.1} parent=1 // pred_check
      _
    $region35: #{tpu_custom_call.1} parent=1 // pred_check_branch
      %92 = sbr.rel (0) target = $region37
    $region36: #{tpu_custom_call.1} parent=1 // pred_region
      %93 = dma.done [#allocation3], 1024
    $region37: #{tpu_custom_call.1} parent=1 // pred_fallthru
      _
    // Predicated region
    $region38: #{tpu_custom_call.1} parent=1 // pred_check
      _
    $region39: #{tpu_custom_call.1} parent=1 // pred_check_branch
      %95 = sbr.rel (0) target = $region41
    $region40: #{tpu_custom_call.1} parent=1 // pred_region
      %96 = dma.done [#allocation6], 1024
    $region41: #{tpu_custom_call.1} parent=1 // pred_fallthru
      _
    // Predicated region
    $region42: #{tpu_custom_call.1} parent=1 // pred_check
      _
    $region43: #{tpu_custom_call.1} parent=1 // pred_check_branch
      %98 = sbr.rel (0) target = $region45
    $region44: #{tpu_custom_call.1} parent=1 // pred_region
      %99 = dma.done [#allocation6], 2048
    $region45: #{tpu_custom_call.1} parent=1 // pred_fallthru
      _
    // Predicated region
    $region46: #{tpu_custom_call.1} parent=1 // pred_check
      _
    $region47: #{tpu_custom_call.1} parent=1 // pred_check_branch
      %101 = sbr.rel (0) target = $region49
    $region48: #{tpu_custom_call.1} parent=1 // pred_region
      %102 = dma.done [#allocation9], 2048
    $region49: #{tpu_custom_call.1} parent=1 // pred_fallthru
      _
    // Predicated region
    $region50: #{tpu_custom_call.1} parent=1 // pred_check
      _
    $region51: #{tpu_custom_call.1} parent=1 // pred_check_branch
      %104 = sbr.rel (0) target = $region53
    $region52: #{tpu_custom_call.1} parent=1 // pred_region
      %105 = dma.done [#allocation9], 2048
    $region53: #{tpu_custom_call.1} parent=1 // pred_fallthru
      _
    %v106 = vld [vmem:[#allocation2] sm:$0xff]
    %v107 = vld [vmem:[#allocation2 + $0x8] sm:$0xff]
    %v108 = vld [vmem:[#allocation2 + $0x10] sm:$0xff]
    %v109 = vld [vmem:[#allocation2 + $0x18] sm:$0xff]
    %v110 = vld [vmem:[#allocation2 + $0x20] sm:$0xff]
    %v111 = vld [vmem:[#allocation2 + $0x28] sm:$0xff]
    %v112 = vld [vmem:[#allocation2 + $0x30] sm:$0xff]
    %v113 = vld [vmem:[#allocation2 + $0x38] sm:$0xff]
    %v114 = vld [vmem:[#allocation5] sm:$0xff]
    %v115 = vld [vmem:[#allocation5 + $0x8] sm:$0xff]
    %v116 = vld [vmem:[#allocation5 + $0x10] sm:$0xff]
    %v117 = vld [vmem:[#allocation5 + $0x18] sm:$0xff]
    %v118 = vld [vmem:[#allocation5 + $0x20] sm:$0xff]
    %v119 = vld [vmem:[#allocation5 + $0x28] sm:$0xff]
    %v120 = vld [vmem:[#allocation5 + $0x30] sm:$0xff]
    %v121 = vld [vmem:[#allocation5 + $0x38] sm:$0xff]
    %v122 = vld [vmem:[#allocation7] sm:$0xff]
    %v123 = vld [vmem:[#allocation7 + $0x8] sm:$0xff]
    %v124 = vld [vmem:[#allocation7 + $0x10] sm:$0xff]
    %v125 = vld [vmem:[#allocation7 + $0x18] sm:$0xff]
    %v126 = vld [vmem:[#allocation7 + $0x20] sm:$0xff]
    %v127 = vld [vmem:[#allocation7 + $0x28] sm:$0xff]
    %v128 = vld [vmem:[#allocation7 + $0x30] sm:$0xff]
    %v129 = vld [vmem:[#allocation7 + $0x38] sm:$0xff]
    %v130 = vld [vmem:[#allocation7 + $0x40] sm:$0xff]
    %v131 = vld [vmem:[#allocation7 + $0x48] sm:$0xff]
    %v132 = vld [vmem:[#allocation7 + $0x50] sm:$0xff]
    %v133 = vld [vmem:[#allocation7 + $0x58] sm:$0xff]
    %v134 = vld [vmem:[#allocation7 + $0x60] sm:$0xff]
    %v135 = vld [vmem:[#allocation7 + $0x68] sm:$0xff]
    %v136 = vld [vmem:[#allocation7 + $0x70] sm:$0xff]
    %v137 = vld [vmem:[#allocation7 + $0x78] sm:$0xff]
    %v138 = vld [vmem:[%s3] sm:$0x1]
    %v140 = vlaneseq
    %v141 = vshrl.u32 %v140, 7
    %v142 = vsub.s32 0, %v141
    %v143 = vrot.slane %v138, %v142
    %145 = vmatprep.subr.mxu0 0.0
    %146 = vmatpush1.msra.mxu0 %v137
    %147 = vmatprep.subr.mxu0 0.0
    %148 = vmatpush1.msra.mxu0 %v136
    %149 = vmatprep.subr.mxu0 0.0
    %150 = vmatpush1.msra.mxu0 %v135
    %151 = vmatprep.subr.mxu0 0.0
    %152 = vmatpush1.msra.mxu0 %v134
    %153 = vmatprep.subr.mxu0 0.0
    %154 = vmatpush1.msra.mxu0 %v133
    %155 = vmatprep.subr.mxu0 0.0
    %156 = vmatpush1.msra.mxu0 %v132
    %157 = vmatprep.subr.mxu0 0.0
    %158 = vmatpush1.msra.mxu0 %v131
    %159 = vmatprep.subr.mxu0 0.0
    %160 = vmatpush1.msra.mxu0 %v130
    %161 = vmatprep.subr.mxu0 0.0
    %162 = vmatpush1.msra.mxu0 %v129
    %163 = vmatprep.subr.mxu0 0.0
    %164 = vmatpush1.msra.mxu0 %v128
    %165 = vmatprep.subr.mxu0 0.0
    %166 = vmatpush1.msra.mxu0 %v127
    %167 = vmatprep.subr.mxu0 0.0
    %168 = vmatpush1.msra.mxu0 %v126
    %169 = vmatprep.subr.mxu0 0.0
    %170 = vmatpush1.msra.mxu0 %v125
    %171 = vmatprep.subr.mxu0 0.0
    %172 = vmatpush1.msra.mxu0 %v124
    %173 = vmatprep.subr.mxu0 0.0
    %174 = vmatpush1.msra.mxu0 %v123
    %175 = vmatprep.subr.mxu0 0.0
    %176 = vmatpush1.msra.mxu0 %v122
    %177 = vmatprep.subr.mxu0 0.0
    %178 = vmatpush2.msra.mxu0 0.0
    %179 = vmatprep.subr.mxu0 0.0
    %180 = vmatpush2.msra.mxu0 0.0
    %181 = vmatprep.subr.mxu0 0.0
    %182 = vmatpush2.msra.mxu0 0.0
    %183 = vmatprep.subr.mxu0 0.0
    %184 = vmatpush2.msra.mxu0 0.0
    %185 = vmatprep.subr.mxu0 0.0
    %186 = vmatpush2.msra.mxu0 0.0
    %187 = vmatprep.subr.mxu0 0.0
    %188 = vmatpush2.msra.mxu0 0.0
    %189 = vmatprep.subr.mxu0 0.0
    %190 = vmatpush2.msra.mxu0 0.0
    %191 = vmatprep.subr.mxu0 0.0
    %192 = vmatpush2.msra.mxu0 0.0
    %193 = vmatprep.subr.mxu0 0.0
    %194 = vmatpush2.msra.mxu0 0.0
    %195 = vmatprep.subr.mxu0 0.0
    %196 = vmatpush2.msra.mxu0 0.0
    %197 = vmatprep.subr.mxu0 0.0
    %198 = vmatpush2.msra.mxu0 0.0
    %199 = vmatprep.subr.mxu0 0.0
    %200 = vmatpush2.msra.mxu0 0.0
    %201 = vmatprep.subr.mxu0 0.0
    %202 = vmatpush2.msra.mxu0 0.0
    %203 = vmatprep.subr.mxu0 0.0
    %204 = vmatpush2.msra.mxu0 0.0
    %205 = vmatprep.subr.mxu0 0.0
    %206 = vmatpush2.msra.mxu0 0.0
    %207 = vmatprep.subr.mxu0 0.0
    %208 = vmatpush2.msra.mxu0 0.0
    %209 = vmatprep.mubr.f32.mxu0 0.0
    %210 = vmatmul.mubr.f32.gmra.mxu0 %v106
    %v211 = vpop.f32.mrf.mxu0
    %v212 = vadd.f32 %v143, %v211
    %v213 = vpop.f32.mrf.mxu0
    %214 = vmatprep.mubr.f32.mxu0 0.0
    %215 = vmatmul.mubr.f32.gmra.mxu0 %v107
    %v216 = vpop.f32.mrf.mxu0
    %v217 = vadd.f32 %v143, %v216
    %v218 = vpop.f32.mrf.mxu0
    %219 = vmatprep.mubr.f32.mxu0 0.0
    %220 = vmatmul.mubr.f32.gmra.mxu0 %v108
    %v221 = vpop.f32.mrf.mxu0
    %v222 = vadd.f32 %v143, %v221
    %v223 = vpop.f32.mrf.mxu0
    %224 = vmatprep.mubr.f32.mxu0 0.0
    %225 = vmatmul.mubr.f32.gmra.mxu0 %v109
    %v226 = vpop.f32.mrf.mxu0
    %v227 = vadd.f32 %v143, %v226
    %v228 = vpop.f32.mrf.mxu0
    %229 = vmatprep.mubr.f32.mxu0 0.0
    %230 = vmatmul.mubr.f32.gmra.mxu0 %v110
    %v231 = vpop.f32.mrf.mxu0
    %v232 = vadd.f32 %v143, %v231
    %v233 = vpop.f32.mrf.mxu0
    %234 = vmatprep.mubr.f32.mxu0 0.0
    %235 = vmatmul.mubr.f32.gmra.mxu0 %v111
    %v236 = vpop.f32.mrf.mxu0
    %v237 = vadd.f32 %v143, %v236
    %v238 = vpop.f32.mrf.mxu0
    %239 = vmatprep.mubr.f32.mxu0 0.0
    %240 = vmatmul.mubr.f32.gmra.mxu0 %v112
    %v241 = vpop.f32.mrf.mxu0
    %v242 = vadd.f32 %v143, %v241
    %v243 = vpop.f32.mrf.mxu0
    %244 = vmatprep.mubr.f32.mxu0 0.0
    %245 = vmatmul.mubr.f32.gmra.mxu0 %v113
    %v246 = vpop.f32.mrf.mxu0
    %v247 = vadd.f32 %v143, %v246
    %v248 = vpop.f32.mrf.mxu0
    %249 = vdwg.mxu0
    %v250 = vld [vmem:[#allocation8] sm:$0xff]
    %v251 = vld [vmem:[#allocation8 + $0x8] sm:$0xff]
    %v252 = vld [vmem:[#allocation8 + $0x10] sm:$0xff]
    %v253 = vld [vmem:[#allocation8 + $0x18] sm:$0xff]
    %v254 = vld [vmem:[#allocation8 + $0x20] sm:$0xff]
    %v255 = vld [vmem:[#allocation8 + $0x28] sm:$0xff]
    %v256 = vld [vmem:[#allocation8 + $0x30] sm:$0xff]
    %v257 = vld [vmem:[#allocation8 + $0x38] sm:$0xff]
    %v258 = vld [vmem:[#allocation8 + $0x40] sm:$0xff]
    %v259 = vld [vmem:[#allocation8 + $0x48] sm:$0xff]
    %v260 = vld [vmem:[#allocation8 + $0x50] sm:$0xff]
    %v261 = vld [vmem:[#allocation8 + $0x58] sm:$0xff]
    %v262 = vld [vmem:[#allocation8 + $0x60] sm:$0xff]
    %v263 = vld [vmem:[#allocation8 + $0x68] sm:$0xff]
    %v264 = vld [vmem:[#allocation8 + $0x70] sm:$0xff]
    %v265 = vld [vmem:[#allocation8 + $0x78] sm:$0xff]
    %v266 = vld [vmem:[%s5] sm:$0x1]
    %v268 = vlaneseq
    %v269 = vshrl.u32 %v268, 7
    %v270 = vsub.s32 0, %v269
    %v271 = vrot.slane %v266, %v270
    %273 = vmatprep.subr.mxu0 0.0
    %274 = vmatpush1.msra.mxu0 %v265
    %275 = vmatprep.subr.mxu0 0.0
    %276 = vmatpush1.msra.mxu0 %v264
    %277 = vmatprep.subr.mxu0 0.0
    %278 = vmatpush1.msra.mxu0 %v263
    %279 = vmatprep.subr.mxu0 0.0
    %280 = vmatpush1.msra.mxu0 %v262
    %281 = vmatprep.subr.mxu0 0.0
    %282 = vmatpush1.msra.mxu0 %v261
    %283 = vmatprep.subr.mxu0 0.0
    %284 = vmatpush1.msra.mxu0 %v260
    %285 = vmatprep.subr.mxu0 0.0
    %286 = vmatpush1.msra.mxu0 %v259
    %287 = vmatprep.subr.mxu0 0.0
    %288 = vmatpush1.msra.mxu0 %v258
    %289 = vmatprep.subr.mxu0 0.0
    %290 = vmatpush1.msra.mxu0 %v257
    %291 = vmatprep.subr.mxu0 0.0
    %292 = vmatpush1.msra.mxu0 %v256
    %293 = vmatprep.subr.mxu0 0.0
    %294 = vmatpush1.msra.mxu0 %v255
    %295 = vmatprep.subr.mxu0 0.0
    %296 = vmatpush1.msra.mxu0 %v254
    %297 = vmatprep.subr.mxu0 0.0
    %298 = vmatpush1.msra.mxu0 %v253
    %299 = vmatprep.subr.mxu0 0.0
    %300 = vmatpush1.msra.mxu0 %v252
    %301 = vmatprep.subr.mxu0 0.0
    %302 = vmatpush1.msra.mxu0 %v251
    %303 = vmatprep.subr.mxu0 0.0
    %304 = vmatpush1.msra.mxu0 %v250
    %305 = vmatprep.subr.mxu0 0.0
    %306 = vmatpush2.msra.mxu0 0.0
    %307 = vmatprep.subr.mxu0 0.0
    %308 = vmatpush2.msra.mxu0 0.0
    %309 = vmatprep.subr.mxu0 0.0
    %310 = vmatpush2.msra.mxu0 0.0
    %311 = vmatprep.subr.mxu0 0.0
    %312 = vmatpush2.msra.mxu0 0.0
    %313 = vmatprep.subr.mxu0 0.0
    %314 = vmatpush2.msra.mxu0 0.0
    %315 = vmatprep.subr.mxu0 0.0
    %316 = vmatpush2.msra.mxu0 0.0
    %317 = vmatprep.subr.mxu0 0.0
    %318 = vmatpush2.msra.mxu0 0.0
    %319 = vmatprep.subr.mxu0 0.0
    %320 = vmatpush2.msra.mxu0 0.0
    %321 = vmatprep.subr.mxu0 0.0
    %322 = vmatpush2.msra.mxu0 0.0
    %323 = vmatprep.subr.mxu0 0.0
    %324 = vmatpush2.msra.mxu0 0.0
    %325 = vmatprep.subr.mxu0 0.0
    %326 = vmatpush2.msra.mxu0 0.0
    %327 = vmatprep.subr.mxu0 0.0
    %328 = vmatpush2.msra.mxu0 0.0
    %329 = vmatprep.subr.mxu0 0.0
    %330 = vmatpush2.msra.mxu0 0.0
    %331 = vmatprep.subr.mxu0 0.0
    %332 = vmatpush2.msra.mxu0 0.0
    %333 = vmatprep.subr.mxu0 0.0
    %334 = vmatpush2.msra.mxu0 0.0
    %335 = vmatprep.subr.mxu0 0.0
    %336 = vmatpush2.msra.mxu0 0.0
    %337 = vmatprep.mubr.f32.mxu0 0.0
    %338 = vmatmul.mubr.f32.gmra.mxu0 %v114
    %v339 = vpop.f32.mrf.mxu0
    %v340 = vadd.f32 %v271, %v339
    %v341 = vpop.f32.mrf.mxu0
    %342 = vmatprep.mubr.f32.mxu0 0.0
    %343 = vmatmul.mubr.f32.gmra.mxu0 %v115
    %v344 = vpop.f32.mrf.mxu0
    %v345 = vadd.f32 %v271, %v344
    %v346 = vpop.f32.mrf.mxu0
    %347 = vmatprep.mubr.f32.mxu0 0.0
    %348 = vmatmul.mubr.f32.gmra.mxu0 %v116
    %v349 = vpop.f32.mrf.mxu0
    %v350 = vadd.f32 %v271, %v349
    %v351 = vpop.f32.mrf.mxu0
    %352 = vmatprep.mubr.f32.mxu0 0.0
    %353 = vmatmul.mubr.f32.gmra.mxu0 %v117
    %v354 = vpop.f32.mrf.mxu0
    %v355 = vadd.f32 %v271, %v354
    %v356 = vpop.f32.mrf.mxu0
    %357 = vmatprep.mubr.f32.mxu0 0.0
    %358 = vmatmul.mubr.f32.gmra.mxu0 %v118
    %v359 = vpop.f32.mrf.mxu0
    %v360 = vadd.f32 %v271, %v359
    %v361 = vpop.f32.mrf.mxu0
    %362 = vmatprep.mubr.f32.mxu0 0.0
    %363 = vmatmul.mubr.f32.gmra.mxu0 %v119
    %v364 = vpop.f32.mrf.mxu0
    %v365 = vadd.f32 %v271, %v364
    %v366 = vpop.f32.mrf.mxu0
    %367 = vmatprep.mubr.f32.mxu0 0.0
    %368 = vmatmul.mubr.f32.gmra.mxu0 %v120
    %v369 = vpop.f32.mrf.mxu0
    %v370 = vadd.f32 %v271, %v369
    %v371 = vpop.f32.mrf.mxu0
    %372 = vmatprep.mubr.f32.mxu0 0.0
    %373 = vmatmul.mubr.f32.gmra.mxu0 %v121
    %v374 = vpop.f32.mrf.mxu0
    %v375 = vadd.f32 %v271, %v374
    %v376 = vpop.f32.mrf.mxu0
    %377 = vdwg.mxu0
    %v378 = vmax.f32 %v212, %v217
    %v379 = vrot.slane %v378, 4
    %v380 = vmax.f32 %v378, %v379
    %v381 = vrot.slane %v380, 2
    %v382 = vmax.f32 %v380, %v381
    %v383 = vrot.slane %v382, 1
    %v384 = vmax.f32 %v382, %v383
    %v385 = vmax.f32 %v222, %v227
    %v386 = vrot.slane %v385, 4
    %v387 = vmax.f32 %v385, %v386
    %v388 = vrot.slane %v387, 2
    %v389 = vmax.f32 %v387, %v388
    %v390 = vrot.slane %v389, 1
    %v391 = vmax.f32 %v389, %v390
    %v392 = vmax.f32 %v232, %v237
    %v393 = vrot.slane %v392, 4
    %v394 = vmax.f32 %v392, %v393
    %v395 = vrot.slane %v394, 2
    %v396 = vmax.f32 %v394, %v395
    %v397 = vrot.slane %v396, 1
    %v398 = vmax.f32 %v396, %v397
    %v399 = vmax.f32 %v242, %v247
    %v400 = vrot.slane %v399, 4
    %v401 = vmax.f32 %v399, %v400
    %v402 = vrot.slane %v401, 2
    %v403 = vmax.f32 %v401, %v402
    %v404 = vrot.slane %v403, 1
    %v405 = vmax.f32 %v403, %v404
    %v406 = vadd.f32 %v212, %v217
    %v407 = vrot.slane %v406, 4
    %v408 = vadd.f32 %v406, %v407
    %v409 = vrot.slane %v408, 2
    %v410 = vadd.f32 %v408, %v409
    %v411 = vrot.slane %v410, 1
    %v412 = vadd.f32 %v410, %v411
    %v413 = vadd.f32 %v222, %v227
    %v414 = vrot.slane %v413, 4
    %v415 = vadd.f32 %v413, %v414
    %v416 = vrot.slane %v415, 2
    %v417 = vadd.f32 %v415, %v416
    %v418 = vrot.slane %v417, 1
    %v419 = vadd.f32 %v417, %v418
    %v420 = vadd.f32 %v232, %v237
    %v421 = vrot.slane %v420, 4
    %v422 = vadd.f32 %v420, %v421
    %v423 = vrot.slane %v422, 2
    %v424 = vadd.f32 %v422, %v423
    %v425 = vrot.slane %v424, 1
    %v426 = vadd.f32 %v424, %v425
    %v427 = vadd.f32 %v242, %v247
    %v428 = vrot.slane %v427, 4
    %v429 = vadd.f32 %v427, %v428
    %v430 = vrot.slane %v429, 2
    %v431 = vadd.f32 %v429, %v430
    %v432 = vrot.slane %v431, 1
    %v433 = vadd.f32 %v431, %v432
    %v434 = vrcp.pop 16.0
    %v435 = vmul.f32 %v412, %v434
    %v436 = vmul.f32 %v419, %v434
    %v437 = vmul.f32 %v426, %v434
    %v438 = vmul.f32 %v433, %v434
    %v439 = vadd.f32 %v384, %v435
    %v440 = vadd.f32 %v391, %v436
    %v441 = vadd.f32 %v398, %v437
    %v442 = vadd.f32 %v405, %v438
    %v443 = vadd.f32 %v340, %v345
    %v444 = vrot.slane %v443, 4
    %v445 = vadd.f32 %v443, %v444
    %v446 = vrot.slane %v445, 2
    %v447 = vadd.f32 %v445, %v446
    %v448 = vrot.slane %v447, 1
    %v449 = vadd.f32 %v447, %v448
    %v450 = vadd.f32 %v350, %v355
    %v451 = vrot.slane %v450, 4
    %v452 = vadd.f32 %v450, %v451
    %v453 = vrot.slane %v452, 2
    %v454 = vadd.f32 %v452, %v453
    %v455 = vrot.slane %v454, 1
    %v456 = vadd.f32 %v454, %v455
    %v457 = vadd.f32 %v360, %v365
    %v458 = vrot.slane %v457, 4
    %v459 = vadd.f32 %v457, %v458
    %v460 = vrot.slane %v459, 2
    %v461 = vadd.f32 %v459, %v460
    %v462 = vrot.slane %v461, 1
    %v463 = vadd.f32 %v461, %v462
    %v464 = vadd.f32 %v370, %v375
    %v465 = vrot.slane %v464, 4
    %v466 = vadd.f32 %v464, %v465
    %v467 = vrot.slane %v466, 2
    %v468 = vadd.f32 %v466, %v467
    %v469 = vrot.slane %v468, 1
    %v470 = vadd.f32 %v468, %v469
    %v471 = vmul.f32 %v449, %v434
    %v472 = vmul.f32 %v456, %v434
    %v473 = vmul.f32 %v463, %v434
    %v474 = vmul.f32 %v470, %v434
    %vm479 = vcmask 1041409
    %v480 = vsel %vm479, %v440, %v439
    %vm481 = vcmask 1042434
    %v482 = vsel %vm481, %v441, %v480
    %vm483 = vcmask 1043459
    %v484 = vsel %vm483, %v442, %v482
    %vm490 = vcmask 1045509
    %v491 = vsel %vm490, %v472, %v471
    %vm492 = vcmask 1046534
    %v493 = vsel %vm492, %v473, %v491
    %vm494 = vcmask 1047559
    %v495 = vsel %vm494, %v474, %v493
    %vm497 = vcmask 1043456
    %v498 = vsel %vm497, %v484, %v495
    %v499 = vld [vmem:[#allocation10] sm:$0xff]
    %v500 = vld [vmem:[#allocation10 + $0x8] sm:$0xff]
    %v501 = vld [vmem:[#allocation10 + $0x10] sm:$0xff]
    %v502 = vld [vmem:[#allocation10 + $0x18] sm:$0xff]
    %v503 = vld [vmem:[#allocation10 + $0x20] sm:$0xff]
    %v504 = vld [vmem:[#allocation10 + $0x28] sm:$0xff]
    %v505 = vld [vmem:[#allocation10 + $0x30] sm:$0xff]
    %v506 = vld [vmem:[#allocation10 + $0x38] sm:$0xff]
    %v507 = vld [vmem:[#allocation10 + $0x40] sm:$0xff]
    %v508 = vld [vmem:[#allocation10 + $0x48] sm:$0xff]
    %v509 = vld [vmem:[#allocation10 + $0x50] sm:$0xff]
    %v510 = vld [vmem:[#allocation10 + $0x58] sm:$0xff]
    %v511 = vld [vmem:[#allocation10 + $0x60] sm:$0xff]
    %v512 = vld [vmem:[#allocation10 + $0x68] sm:$0xff]
    %v513 = vld [vmem:[#allocation10 + $0x70] sm:$0xff]
    %v514 = vld [vmem:[#allocation10 + $0x78] sm:$0xff]
    %v515 = vld [vmem:[%s7] sm:$0x1]
    %v517 = vlaneseq
    %v518 = vshrl.u32 %v517, 7
    %v519 = vsub.s32 0, %v518
    %v520 = vrot.slane %v515, %v519
    %522 = vmatprep.subr.mxu0 0.0
    %523 = vmatpush1.msra.mxu0 %v514
    %524 = vmatprep.subr.mxu0 0.0
    %525 = vmatpush1.msra.mxu0 %v513
    %526 = vmatprep.subr.mxu0 0.0
    %527 = vmatpush1.msra.mxu0 %v512
    %528 = vmatprep.subr.mxu0 0.0
    %529 = vmatpush1.msra.mxu0 %v511
    %530 = vmatprep.subr.mxu0 0.0
    %531 = vmatpush1.msra.mxu0 %v510
    %532 = vmatprep.subr.mxu0 0.0
    %533 = vmatpush1.msra.mxu0 %v509
    %534 = vmatprep.subr.mxu0 0.0
    %535 = vmatpush1.msra.mxu0 %v508
    %536 = vmatprep.subr.mxu0 0.0
    %537 = vmatpush1.msra.mxu0 %v507
    %538 = vmatprep.subr.mxu0 0.0
    %539 = vmatpush1.msra.mxu0 %v506
    %540 = vmatprep.subr.mxu0 0.0
    %541 = vmatpush1.msra.mxu0 %v505
    %542 = vmatprep.subr.mxu0 0.0
    %543 = vmatpush1.msra.mxu0 %v504
    %544 = vmatprep.subr.mxu0 0.0
    %545 = vmatpush1.msra.mxu0 %v503
    %546 = vmatprep.subr.mxu0 0.0
    %547 = vmatpush1.msra.mxu0 %v502
    %548 = vmatprep.subr.mxu0 0.0
    %549 = vmatpush1.msra.mxu0 %v501
    %550 = vmatprep.subr.mxu0 0.0
    %551 = vmatpush1.msra.mxu0 %v500
    %552 = vmatprep.subr.mxu0 0.0
    %553 = vmatpush1.msra.mxu0 %v499
    %554 = vmatprep.subr.mxu0 0.0
    %555 = vmatpush2.msra.mxu0 0.0
    %556 = vmatprep.subr.mxu0 0.0
    %557 = vmatpush2.msra.mxu0 0.0
    %558 = vmatprep.subr.mxu0 0.0
    %559 = vmatpush2.msra.mxu0 0.0
    %560 = vmatprep.subr.mxu0 0.0
    %561 = vmatpush2.msra.mxu0 0.0
    %562 = vmatprep.subr.mxu0 0.0
    %563 = vmatpush2.msra.mxu0 0.0
    %564 = vmatprep.subr.mxu0 0.0
    %565 = vmatpush2.msra.mxu0 0.0
    %566 = vmatprep.subr.mxu0 0.0
    %567 = vmatpush2.msra.mxu0 0.0
    %568 = vmatprep.subr.mxu0 0.0
    %569 = vmatpush2.msra.mxu0 0.0
    %570 = vmatprep.subr.mxu0 0.0
    %571 = vmatpush2.msra.mxu0 0.0
    %572 = vmatprep.subr.mxu0 0.0
    %573 = vmatpush2.msra.mxu0 0.0
    %574 = vmatprep.subr.mxu0 0.0
    %575 = vmatpush2.msra.mxu0 0.0
    %576 = vmatprep.subr.mxu0 0.0
    %577 = vmatpush2.msra.mxu0 0.0
    %578 = vmatprep.subr.mxu0 0.0
    %579 = vmatpush2.msra.mxu0 0.0
    %580 = vmatprep.subr.mxu0 0.0
    %581 = vmatpush2.msra.mxu0 0.0
    %582 = vmatprep.subr.mxu0 0.0
    %583 = vmatpush2.msra.mxu0 0.0
    %584 = vmatprep.subr.mxu0 0.0
    %585 = vmatpush2.msra.mxu0 0.0
    %586 = vmatprep.mubr.f32.mxu0 0.0
    %587 = vmatmul.mubr.f32.gmra.mxu0 %v498
    %v588 = vpop.f32.mrf.mxu0
    %v589 = vadd.f32 %v520, %v588
    %v590 = vpop.f32.mrf.mxu0
    %591 = vdwg.mxu0
    %v592 = vxor.u32 %v589, 2147483648
    %v593 = vmul.f32 %v592, 1.442695
    %v594 = vpow.pop %v593
    %v595 = vadd.f32 %v594, 1.0
    %v596 = vrcp.pop %v595
    %v597 = vmul.f32 1.0, %v596
    %v599 = vrot.slane %v597, 4
    %v601 = vmax.f32 %v597, %v599
    %v602 = vsub.f32 %v597, %v601
    %v603 = vmul.f32 %v602, 1.442695
    %v604 = vpow.pop %v603
    %v606 = vrot.slane %v601, 4
    %v608 = vsub.f32 %v597, %v606
    %v609 = vmul.f32 %v608, 1.442695
    %v610 = vpow.pop %v609
    %v612 = vrot.slane %v610, 4
    %v614 = vadd.f32 %v604, %v612
    %v615 = vrcp.pop %v614
    %v616 = vmul.f32 1.0, %v615
    %v617 = vmul.f32 %v604, %v616
    %v619 = vrot.slane %v616, 4
    %v621 = vmul.f32 %v610, %v619
    %v623 = vunpack.c.l.s4 1966171168
    %v624 = vunpack.c.0.s8 %v623
    %v625 = vlaneseq
    %v626 = vshrl.u32 %v625, 7
    %v627 = vsub.s32 %v624, %v626
    %v628 = vrot.slane %v597, %v627
    %v629 = vcombine.high %v628, %v628
    %v631 = vunpack.c.l.s4 1966171168
    %v632 = vunpack.c.0.s8 %v631
    %v633 = vlaneseq
    %v634 = vshrl.u32 %v633, 7
    %v635 = vsub.s32 %v632, %v634
    %v636 = vrot.slane %v628, %v635
    %v638 = vunpack.c.l.s4 1966171168
    %v639 = vunpack.c.0.s8 %v638
    %v640 = vlaneseq
    %v641 = vshrl.u32 %v640, 7
    %v642 = vsub.s32 %v639, %v641
    %v643 = vrot.slane %v629, %v642
    %v644 = vcombine.high %v636, %v636
    %v645 = vcombine.high %v643, %v643
    %v646 = vlaneseq
    %v647 = vshrl.u32 %v646, 7
    %v648 = vsub.s32 0, %v647
    %v649 = vrot.slane %v636, %v648
    %v650 = vlaneseq
    %v651 = vshrl.u32 %v650, 7
    %v652 = vsub.s32 0, %v651
    %v653 = vrot.slane %v643, %v652
    %v654 = vlaneseq
    %v655 = vshrl.u32 %v654, 7
    %v656 = vsub.s32 0, %v655
    %v657 = vrot.slane %v644, %v656
    %v658 = vlaneseq
    %v659 = vshrl.u32 %v658, 7
    %v660 = vsub.s32 0, %v659
    %v661 = vrot.slane %v645, %v660
    %v666 = vmul.f32 %v106, %v649
    %v667 = vmul.f32 %v107, %v649
    %v668 = vmul.f32 %v108, %v653
    %v669 = vmul.f32 %v109, %v653
    %v670 = vmul.f32 %v110, %v657
    %v671 = vmul.f32 %v111, %v657
    %v672 = vmul.f32 %v112, %v661
    %v673 = vmul.f32 %v113, %v661
    %v674 = vcombine.high %v597, %v597
    %v676 = vunpack.c.l.s4 1966171168
    %v677 = vunpack.c.0.s8 %v676
    %v678 = vlaneseq
    %v679 = vshrl.u32 %v678, 7
    %v680 = vsub.s32 %v677, %v679
    %v681 = vrot.slane %v674, %v680
    %v682 = vcombine.high %v681, %v681
    %v684 = vunpack.c.l.s4 1966171168
    %v685 = vunpack.c.0.s8 %v684
    %v686 = vlaneseq
    %v687 = vshrl.u32 %v686, 7
    %v688 = vsub.s32 %v685, %v687
    %v689 = vrot.slane %v681, %v688
    %v691 = vunpack.c.l.s4 1966171168
    %v692 = vunpack.c.0.s8 %v691
    %v693 = vlaneseq
    %v694 = vshrl.u32 %v693, 7
    %v695 = vsub.s32 %v692, %v694
    %v696 = vrot.slane %v682, %v695
    %v697 = vcombine.high %v689, %v689
    %v698 = vcombine.high %v696, %v696
    %v703 = vlaneseq
    %v704 = vshrl.u32 %v703, 7
    %v705 = vsub.s32 0, %v704
    %v706 = vrot.slane %v689, %v705
    %v707 = vlaneseq
    %v708 = vshrl.u32 %v707, 7
    %v709 = vsub.s32 0, %v708
    %v710 = vrot.slane %v696, %v709
    %v711 = vlaneseq
    %v712 = vshrl.u32 %v711, 7
    %v713 = vsub.s32 0, %v712
    %v714 = vrot.slane %v697, %v713
    %v715 = vlaneseq
    %v716 = vshrl.u32 %v715, 7
    %v717 = vsub.s32 0, %v716
    %v718 = vrot.slane %v698, %v717
    %v723 = vmul.f32 %v114, %v706
    %v724 = vmul.f32 %v115, %v706
    %v725 = vmul.f32 %v116, %v710
    %v726 = vmul.f32 %v117, %v710
    %v727 = vmul.f32 %v118, %v714
    %v728 = vmul.f32 %v119, %v714
    %v729 = vmul.f32 %v120, %v718
    %v730 = vmul.f32 %v121, %v718
    %v733 = vunpack.c.l.s4 1966171168
    %v734 = vunpack.c.0.s8 %v733
    %v735 = vlaneseq
    %v736 = vshrl.u32 %v735, 7
    %v737 = vsub.s32 %v734, %v736
    %v738 = vrot.slane %v617, %v737
    %v739 = vcombine.high %v738, %v738
    %v741 = vunpack.c.l.s4 1966171168
    %v742 = vunpack.c.0.s8 %v741
    %v743 = vlaneseq
    %v744 = vshrl.u32 %v743, 7
    %v745 = vsub.s32 %v742, %v744
    %v746 = vrot.slane %v738, %v745
    %v748 = vunpack.c.l.s4 1966171168
    %v749 = vunpack.c.0.s8 %v748
    %v750 = vlaneseq
    %v751 = vshrl.u32 %v750, 7
    %v752 = vsub.s32 %v749, %v751
    %v753 = vrot.slane %v739, %v752
    %v754 = vcombine.high %v746, %v746
    %v755 = vcombine.high %v753, %v753
    %v756 = vlaneseq
    %v757 = vshrl.u32 %v756, 7
    %v758 = vsub.s32 0, %v757
    %v759 = vrot.slane %v746, %v758
    %v760 = vlaneseq
    %v761 = vshrl.u32 %v760, 7
    %v762 = vsub.s32 0, %v761
    %v763 = vrot.slane %v753, %v762
    %v764 = vlaneseq
    %v765 = vshrl.u32 %v764, 7
    %v766 = vsub.s32 0, %v765
    %v767 = vrot.slane %v754, %v766
    %v768 = vlaneseq
    %v769 = vshrl.u32 %v768, 7
    %v770 = vsub.s32 0, %v769
    %v771 = vrot.slane %v755, %v770
    %v776 = vmul.f32 %v666, %v759
    %v777 = vmul.f32 %v667, %v759
    %v778 = vmul.f32 %v668, %v763
    %v779 = vmul.f32 %v669, %v763
    %v780 = vmul.f32 %v670, %v767
    %v781 = vmul.f32 %v671, %v767
    %v782 = vmul.f32 %v672, %v771
    %v783 = vmul.f32 %v673, %v771
    %v785 = vcombine.high %v621, %v621
    %v787 = vunpack.c.l.s4 1966171168
    %v788 = vunpack.c.0.s8 %v787
    %v789 = vlaneseq
    %v790 = vshrl.u32 %v789, 7
    %v791 = vsub.s32 %v788, %v790
    %v792 = vrot.slane %v785, %v791
    %v793 = vcombine.high %v792, %v792
    %v795 = vunpack.c.l.s4 1966171168
    %v796 = vunpack.c.0.s8 %v795
    %v797 = vlaneseq
    %v798 = vshrl.u32 %v797, 7
    %v799 = vsub.s32 %v796, %v798
    %v800 = vrot.slane %v792, %v799
    %v802 = vunpack.c.l.s4 1966171168
    %v803 = vunpack.c.0.s8 %v802
    %v804 = vlaneseq
    %v805 = vshrl.u32 %v804, 7
    %v806 = vsub.s32 %v803, %v805
    %v807 = vrot.slane %v793, %v806
    %v808 = vcombine.high %v800, %v800
    %v809 = vcombine.high %v807, %v807
    %v810 = vlaneseq
    %v811 = vshrl.u32 %v810, 7
    %v812 = vsub.s32 0, %v811
    %v813 = vrot.slane %v800, %v812
    %v814 = vlaneseq
    %v815 = vshrl.u32 %v814, 7
    %v816 = vsub.s32 0, %v815
    %v817 = vrot.slane %v807, %v816
    %v818 = vlaneseq
    %v819 = vshrl.u32 %v818, 7
    %v820 = vsub.s32 0, %v819
    %v821 = vrot.slane %v808, %v820
    %v822 = vlaneseq
    %v823 = vshrl.u32 %v822, 7
    %v824 = vsub.s32 0, %v823
    %v825 = vrot.slane %v809, %v824
    %v830 = vmul.f32 %v723, %v813
    %v831 = vmul.f32 %v724, %v813
    %v832 = vmul.f32 %v725, %v817
    %v833 = vmul.f32 %v726, %v817
    %v834 = vmul.f32 %v727, %v821
    %v835 = vmul.f32 %v728, %v821
    %v836 = vmul.f32 %v729, %v825
    %v837 = vmul.f32 %v730, %v825
    %v838 = vadd.f32 %v776, %v830
    %v839 = vadd.f32 %v777, %v831
    %v840 = vadd.f32 %v778, %v832
    %v841 = vadd.f32 %v779, %v833
    %v842 = vadd.f32 %v780, %v834
    %v843 = vadd.f32 %v781, %v835
    %v844 = vadd.f32 %v782, %v836
    %v845 = vadd.f32 %v783, %v837
    %846 = vst [vmem:[#allocation11] sm:$0xff] %v838
    %847 = vst [vmem:[#allocation11 + $0x8] sm:$0xff] %v839
    %848 = vst [vmem:[#allocation11 + $0x10] sm:$0xff] %v840
    %849 = vst [vmem:[#allocation11 + $0x18] sm:$0xff] %v841
    %850 = vst [vmem:[#allocation11 + $0x20] sm:$0xff] %v842
    %851 = vst [vmem:[#allocation11 + $0x28] sm:$0xff] %v843
    %852 = vst [vmem:[#allocation11 + $0x30] sm:$0xff] %v844
    %853 = vst [vmem:[#allocation11 + $0x38] sm:$0xff] %v845
    %854 = vst [vmem:[#allocation12] sm:$0xff] %v723
    %855 = vst [vmem:[#allocation12 + $0x8] sm:$0xff] %v724
    %856 = vst [vmem:[#allocation12 + $0x10] sm:$0xff] %v725
    %857 = vst [vmem:[#allocation12 + $0x18] sm:$0xff] %v726
    %858 = vst [vmem:[#allocation12 + $0x20] sm:$0xff] %v727
    %859 = vst [vmem:[#allocation12 + $0x28] sm:$0xff] %v728
    %860 = vst [vmem:[#allocation12 + $0x30] sm:$0xff] %v729
    %861 = vst [vmem:[#allocation12 + $0x38] sm:$0xff] %v730
    %862 = vst [vmem:[#allocation14] sm:$0xff] %v830
    %863 = vst [vmem:[#allocation14 + $0x8] sm:$0xff] %v831
    %864 = vst [vmem:[#allocation14 + $0x10] sm:$0xff] %v832
    %865 = vst [vmem:[#allocation14 + $0x18] sm:$0xff] %v833
    %866 = vst [vmem:[#allocation14 + $0x20] sm:$0xff] %v834
    %867 = vst [vmem:[#allocation14 + $0x28] sm:$0xff] %v835
    %868 = vst [vmem:[#allocation14 + $0x30] sm:$0xff] %v836
    %869 = vst [vmem:[#allocation14 + $0x38] sm:$0xff] %v837
    %870 = vst [vmem:[#allocation15] sm:$0xff] %v666
    %871 = vst [vmem:[#allocation15 + $0x8] sm:$0xff] %v667
    %872 = vst [vmem:[#allocation15 + $0x10] sm:$0xff] %v668
    %873 = vst [vmem:[#allocation15 + $0x18] sm:$0xff] %v669
    %874 = vst [vmem:[#allocation15 + $0x20] sm:$0xff] %v670
    %875 = vst [vmem:[#allocation15 + $0x28] sm:$0xff] %v671
    %876 = vst [vmem:[#allocation15 + $0x30] sm:$0xff] %v672
    %877 = vst [vmem:[#allocation15 + $0x38] sm:$0xff] %v673
    %878 = vst [vmem:[#allocation17] sm:$0xff] %v776
    %879 = vst [vmem:[#allocation17 + $0x8] sm:$0xff] %v777
    %880 = vst [vmem:[#allocation17 + $0x10] sm:$0xff] %v778
    %881 = vst [vmem:[#allocation17 + $0x18] sm:$0xff] %v779
    %882 = vst [vmem:[#allocation17 + $0x20] sm:$0xff] %v780
    %883 = vst [vmem:[#allocation17 + $0x28] sm:$0xff] %v781
    %884 = vst [vmem:[#allocation17 + $0x30] sm:$0xff] %v782
    %885 = vst [vmem:[#allocation17 + $0x38] sm:$0xff] %v783
    %vm886 = vcmask 1040384
    %v887 = vsel %vm886, %v689, %v813
    %v888 = vsel %vm886, %v696, %v817
    %v889 = vsel %vm886, %v697, %v821
    %v890 = vsel %vm886, %v698, %v825
    %vm891 = vcmask 1041408
    %v892 = vsel %vm891, %v887, %v649
    %v893 = vsel %vm891, %v888, %v653
    %v894 = vsel %vm891, %v889, %v657
    %v895 = vsel %vm891, %v890, %v661
    %vm896 = vcmask 1042432
    %v897 = vsel %vm896, %v892, %v759
    %v898 = vsel %vm896, %v893, %v763
    %v899 = vsel %vm896, %v894, %v767
    %v900 = vsel %vm896, %v895, %v771
    %v901 = vsel %vm497, %v897, %v439
    %v902 = vsel %vm497, %v898, %v440
    %v903 = vsel %vm497, %v899, %v441
    %v904 = vsel %vm497, %v900, %v442
    %905 = vst [vmem:[%s13] sm:$0x1f] %v901
    %906 = vst [vmem:[%s13 + $0x8] sm:$0x1f] %v902
    %907 = vst [vmem:[%s13 + $0x10] sm:$0x1f] %v903
    %908 = vst [vmem:[%s13 + $0x18] sm:$0x1f] %v904
    // Predicated region
    $region54: #{tpu_custom_call.1} parent=1 // pred_check
      _
    $region55: #{tpu_custom_call.1} parent=1 // pred_check_branch
      %910 = sbr.rel (0) target = $region57
    $region56: #{tpu_custom_call.1} parent=1 // pred_region
      %s912 = ssub.s32 1024, 1024
      %913 = vsyncadd [#allocation4], %s912
      %s914 = sshll.u32 [#allocation11], 4
      %s915 = int_to_ptr.vmem [resolvable:$true] %s914
      %920 = dma.vmem_to_hbm [thread:$0]  %s915, 1024, %s8, [#allocation4], 128, 128, 8
    $region57: #{tpu_custom_call.1} parent=1 // pred_fallthru
      _
    // Predicated region
    $region58: #{tpu_custom_call.1} parent=1 // pred_check
      _
    $region59: #{tpu_custom_call.1} parent=1 // pred_check_branch
      %922 = sbr.rel (0) target = $region61
    $region60: #{tpu_custom_call.1} parent=1 // pred_region
      %s924 = ssub.s32 1024, 1024
      %925 = vsyncadd [#allocation13], %s924
      %s926 = sshll.u32 [#allocation12], 4
      %s927 = int_to_ptr.vmem [resolvable:$true] %s926
      %932 = dma.vmem_to_hbm [thread:$0]  %s927, 1024, %s9, [#allocation13], 128, 128, 8
    $region61: #{tpu_custom_call.1} parent=1 // pred_fallthru
      _
    // Predicated region
    $region62: #{tpu_custom_call.1} parent=1 // pred_check
      _
    $region63: #{tpu_custom_call.1} parent=1 // pred_check_branch
      %934 = sbr.rel (0) target = $region65
    $region64: #{tpu_custom_call.1} parent=1 // pred_region
      %s936 = ssub.s32 1024, 1024
      %937 = vsyncadd [#allocation13], %s936
      %s938 = sshll.u32 [#allocation14], 4
      %s939 = int_to_ptr.vmem [resolvable:$true] %s938
      %944 = dma.vmem_to_hbm [thread:$0]  %s939, 1024, %s10, [#allocation13], 128, 128, 8
    $region65: #{tpu_custom_call.1} parent=1 // pred_fallthru
      _
    // Predicated region
    $region66: #{tpu_custom_call.1} parent=1 // pred_check
      _
    $region67: #{tpu_custom_call.1} parent=1 // pred_check_branch
      %946 = sbr.rel (0) target = $region69
    $region68: #{tpu_custom_call.1} parent=1 // pred_region
      %s948 = ssub.s32 1024, 1024
      %949 = vsyncadd [#allocation16], %s948
      %s950 = sshll.u32 [#allocation15], 4
      %s951 = int_to_ptr.vmem [resolvable:$true] %s950
      %956 = dma.vmem_to_hbm [thread:$0]  %s951, 1024, %s11, [#allocation16], 128, 128, 8
    $region69: #{tpu_custom_call.1} parent=1 // pred_fallthru
      _
    // Predicated region
    $region70: #{tpu_custom_call.1} parent=1 // pred_check
      _
    $region71: #{tpu_custom_call.1} parent=1 // pred_check_branch
      %958 = sbr.rel (0) target = $region73
    $region72: #{tpu_custom_call.1} parent=1 // pred_region
      %s960 = ssub.s32 1024, 1024
      %961 = vsyncadd [#allocation16], %s960
      %s962 = sshll.u32 [#allocation17], 4
      %s963 = int_to_ptr.vmem [resolvable:$true] %s962
      %968 = dma.vmem_to_hbm [thread:$0]  %s963, 1024, %s12, [#allocation16], 128, 128, 8
    $region73: #{tpu_custom_call.1} parent=1 // pred_fallthru
      _
    // Predicated region
    $region74: #{tpu_custom_call.1} parent=1 // pred_check
      _
    $region75: #{tpu_custom_call.1} parent=1 // pred_check_branch
      %970 = sbr.rel (0) target = $region77
    $region76: #{tpu_custom_call.1} parent=1 // pred_region
      _
    $region77: #{tpu_custom_call.1} parent=1 // pred_fallthru
      _
    // Predicated region
    $region78: #{tpu_custom_call.1} parent=1 // pred_check
      _
    $region79: #{tpu_custom_call.1} parent=1 // pred_check_branch
      %972 = sbr.rel (0) target = $region81
    $region80: #{tpu_custom_call.1} parent=1 // pred_region
      %973 = dma.done [#allocation4], 1024
    $region81: #{tpu_custom_call.1} parent=1 // pred_fallthru
      _
    // Predicated region
    $region82: #{tpu_custom_call.1} parent=1 // pred_check
      _
    $region83: #{tpu_custom_call.1} parent=1 // pred_check_branch
      %975 = sbr.rel (0) target = $region85
    $region84: #{tpu_custom_call.1} parent=1 // pred_region
      %976 = dma.done [#allocation13], 1024
    $region85: #{tpu_custom_call.1} parent=1 // pred_fallthru
      _
    // Predicated region
    $region86: #{tpu_custom_call.1} parent=1 // pred_check
      _
    $region87: #{tpu_custom_call.1} parent=1 // pred_check_branch
      %978 = sbr.rel (0) target = $region89
    $region88: #{tpu_custom_call.1} parent=1 // pred_region
      %979 = dma.done [#allocation13], 1024
    $region89: #{tpu_custom_call.1} parent=1 // pred_fallthru
      _
    // Predicated region
    $region90: #{tpu_custom_call.1} parent=1 // pred_check
      _
    $region91: #{tpu_custom_call.1} parent=1 // pred_check_branch
      %981 = sbr.rel (0) target = $region93
    $region92: #{tpu_custom_call.1} parent=1 // pred_region
      %982 = dma.done [#allocation16], 1024
    $region93: #{tpu_custom_call.1} parent=1 // pred_fallthru
      _
    // Predicated region
    $region94: #{tpu_custom_call.1} parent=1 // pred_check
      _
    $region95: #{tpu_custom_call.1} parent=1 // pred_check_branch
      %984 = sbr.rel (0) target = $region97
    $region96: #{tpu_custom_call.1} parent=1 // pred_region
      %985 = dma.done [#allocation16], 1024
    $region97: #{tpu_custom_call.1} parent=1 // pred_fallthru
      _
    // Predicated region
    $region98: #{tpu_custom_call.1} parent=1 // pred_check
      _
    $region99: #{tpu_custom_call.1} parent=1 // pred_check_branch
      %987 = sbr.rel (0) target = $region101
    $region100: #{tpu_custom_call.1} parent=1 // pred_region
      _
    $region101: #{tpu_custom_call.1} parent=1 // pred_fallthru
      _
    %988 = vsyncpa [#allocation3], 1
    %989 = vsyncpa [#allocation6], 1
    %990 = vsyncpa [#allocation9], 1
    %991 = vsyncpa [#allocation4], 1
    %992 = vsyncpa [#allocation13], 1
    %993 = vsyncpa [#allocation16], 1

</llo_original>
